<compile_context>
chip_gen: v7x
topology: tpu7x:2x2x1
jax: 0.10.0
libtpu: 0.0.40
codegen_flags: <defaults>
</compile_context>

<pallas_src>
import math
import functools

import jax
import jax.numpy as jnp
import numpy as np
from jax import lax
from jax.experimental import pallas as pl
from jax.experimental.pallas import tpu as pltpu

# TODO(synk): FS is a module-level constant in srcnew that is not shown; pick a
# deterministic value so feedback_delay = int(50 * FS / 1000) = 3 (< seq_len, so
# both the "zero feedback" and "delayed feedback" branches are exercised).
FS = 60
SIGMA_REC = 0.0  # module default; the noise term is exactly zero so it is omitted.


def _round_up(x, m):
    return (x + m - 1) // m * m


# ----------------------------- Pallas kernel ------------------------------- #
def asf_eirnn_kernel(
    u_ref,        # (TC, BB, Hp) f32   pre-projected drive: x@w_ih^T + b_ih + b_hh + b_f
    weff_ref,     # (Hp, Hp)     bf16  (|w_hh| * mask)^T, (in, out) layout
    wffc_ref,     # (Hp, Hp)     bf16  w_fc^T @ w_f^T  (feedback folded through hidden)
    wfc_ref,      # (Hp, Op)     bf16  readout weight (zero rows for I / padded units)
    bfw_ref,      # (1, Hp)      f32   b_fc @ w_f^T
    bfc_ref,      # (1, Op)      f32
    alpha_ref,    # (1, Hp)      f32   per-neuron alpha
    alphas_ref,   # (1, Hp)      f32   per-neuron alpha_s
    out_ref,      # (TC, BB, Op) f32   readout for this chunk
    rnn_ref,      # (TC, BB, Hp) bf16  rnn activity (tanh(state)) for this chunk
    state_sc,     # VMEM (BB, Hp) f32  carried state
    output_sc,    # VMEM (BB, Hp) bf16 carried output (only ever an MXU operand)
    syn_sc,       # VMEM (BB, Hp) f32  carried synapse
    fb_ring_sc,   # VMEM (ring, BB, Hp) bf16 ring buffer of hidden outputs (delayed fb)
    act_sc,       # VMEM (TC, BB, Hp) f32 f32 activity of this chunk (batched readout)
    *,
    time_chunk,
    delay,
    ring,
):
    c = pl.program_id(1)  # time-chunk index; axis 0 is the (parallel) batch-block axis

    @pl.when(c == 0)
    def _():
        state_sc[...] = jnp.zeros_like(state_sc)
        output_sc[...] = jnp.zeros_like(output_sc)
        syn_sc[...] = jnp.zeros_like(syn_sc)
        fb_ring_sc[...] = jnp.zeros_like(fb_ring_sc)

    tc, bb, hp = act_sc.shape
    op = out_ref.shape[-1]

    # Loop-invariant loads.  alpha / alpha_s / bfw stay (1, Hp): the VPU ops
    # broadcast along sublanes for free, no (BB, Hp) copies pinning vregs.
    w_eff = weff_ref[...]
    w_ffc = wffc_ref[...]
    alpha = alpha_ref[...]
    alpha_s = alphas_ref[...]
    bfw = bfw_ref[...]

    t0 = c * time_chunk
    slot_mask = ring - 1  # ring is a power of two -> '&' instead of '%'

    def step(i, carry):
        state, out_b, syn = carry
        t = t0 + i

        # Delayed feedback folded through the hidden state:
        #   fc(h[t-d]) @ w_f^T == h[t-d] @ (w_fc^T w_f^T) + b_fc @ w_f^T.
        # For t < delay the module feeds zeros: the ring slot read then is a
        # never-yet-written (zero-initialized) slot and the where() kills the bias.
        fb = fb_ring_sc[(t - delay) & slot_mask]                 # (BB, Hp) bf16
        fb_term = jnp.where(
            t >= delay,
            jnp.dot(fb, w_ffc, preferred_element_type=jnp.float32) + bfw,
            0.0)

        total = (u_ref[i]
                 + jnp.dot(out_b, w_eff, preferred_element_type=jnp.float32)
                 + fb_term)

        # State / synapse updates in f32 (v5e VPU/EUP have no bf16 path).
        s_new = alpha_s * (total - syn) + syn
        state = alpha * (jnp.tanh(s_new) - state) + state
        # TODO(synk): _sigma_rec * randn_like noise omitted (sigma_rec == 0 here).
        output = jnp.tanh(state)

        out_b = output.astype(jnp.bfloat16)
        fb_ring_sc[t & slot_mask] = out_b
        act_sc[i] = output                                       # f32, for batched readout
        return state, out_b, s_new

    state, out_b, syn = lax.fori_loop(
        0, time_chunk, step,
        (state_sc[...], output_sc[...], syn_sc[...]),
        unroll=True)

    # Carry state across time chunks.
    state_sc[...] = state
    output_sc[...] = out_b
    syn_sc[...] = syn

    # Off the serial path: bulk bf16 writeback of the chunk's activity and ONE
    # batched readout matmul over all time_chunk steps.
    acts = act_sc[...]
    rnn_ref[...] = acts.astype(rnn_ref.dtype)
    out = jnp.dot(acts.reshape(tc * bb, hp).astype(wfc_ref.dtype), wfc_ref[...],
                  preferred_element_type=jnp.float32) + bfc_ref[...]
    out_ref[...] = out.reshape(tc, bb, op)


# ------------------------------- Wrapper ------------------------------------ #
def asf_eirnn_forward(x, params, feedback_delay, *, time_chunk=None,
                      batch_block=128, weight_dtype=jnp.bfloat16):
    """x: (T, B, input_size) float32. Returns (out (T,B,O), rnn_activity (T,B,H))."""
    T, B, I = x.shape
    H = params["w_ih"].shape[0]
    O = params["w_fc"].shape[0]

    # The module indexes out[t - feedback_delay]; delay == 0 would read the
    # same-step output (and errors in PyTorch), so assert rather than clamp.
    assert int(feedback_delay) >= 1, "feedback_delay must be >= 1"
    delay = int(feedback_delay)
    ring = int(pl.next_power_of_2(delay + 1))  # power-of-two ring

    f32 = jnp.float32
    Hp = _round_up(H, 128)   # lane-dense hidden dim -> unmasked full-lane stores
    Op = _round_up(O, 128)
    # Rows fed per MXU push; raise toward 128 (v5e) / 256 (v6e/v7x) when B allows.
    BB = min(batch_block, _round_up(B, 8))
    Bp = _round_up(B, BB)
    NB = Bp // BB            # v7x: keep NB a multiple of 2 at real batch sizes so the
                             # 'parallel' axis actually shards across both TensorCores.

    # Largest divisor of T up to 32.  At real H re-derive the cap from the VMEM
    # budget (double-buffered u/out/rnn chunks); roughly halve it on v7x (64 MiB).
    if time_chunk is None:
        time_chunk = next(tcs for tcs in range(min(T, 32), 0, -1) if T % tcs == 0)
    TC = int(time_chunk)
    assert T % TC == 0
    NC = T // TC

    def pad2(w, r, c):
        return jnp.zeros((r, c), f32).at[:w.shape[0], :w.shape[1]].set(w.astype(f32))

    def pad_row(v, n):
        v = jnp.asarray(v, f32).reshape(-1)
        return jnp.zeros((1, n), f32).at[0, :v.shape[0]].set(v)

    # EIRecLinear effective weight: |W| * mask  (+1 E cols, -1 I cols, 0 diag).
    w_eff = jnp.abs(params["w_hh"]) * params["mask"]              # (H, H)

    # Input drive has no recurrence dependence: project the whole sequence with one
    # batched XLA matmul in f32 and fold all three recurrence biases into it.
    b_tot = (params["b_ih"] + params["b_hh"] + params["b_f"]).astype(f32)
    u = jnp.einsum("tbi,hi->tbh", x.astype(f32), params["w_ih"].astype(f32)) + b_tot
    u_pad = jnp.zeros((T, Bp, Hp), f32).at[:, :B, :H].set(u)

    # Recurrent weights in (in, out) layout.  Recurrence matmuls run in weight_dtype
    # (bf16) with f32 accumulation; pass weight_dtype=jnp.float32 if long-sequence
    # fidelity matters (bf16 error compounds through the recurrence).
    w_eff_t = pad2(w_eff.T, Hp, Hp).astype(weight_dtype)
    # Feedback folded through the hidden state:
    #   fc(h_e) @ w_f^T == h @ pad(w_fc^T @ w_f^T) + b_fc @ w_f^T
    # (zero rows for inhibitory / padded units).
    w_ffc = pad2(params["w_fc"].T @ params["w_f"].T, Hp, Hp).astype(weight_dtype)
    w_fc_t = pad2(params["w_fc"].T, Hp, Op).astype(weight_dtype)
    b_fw = pad_row(params["b_fc"] @ params["w_f"].T, Hp)
    b_fc = pad_row(params["b_fc"], Op)
    alpha_p = pad_row(params["alpha"], Hp)
    alphas_p = pad_row(params["alpha_s"], Hp)

    kernel = functools.partial(asf_eirnn_kernel,
                               time_chunk=TC, delay=delay, ring=ring)

    def const_spec(shape):
        zero = (0,) * len(shape)
        # Stationary across the grid.  At realistic H add pipeline_mode=pl.Buffered(1)
        # so these are single-buffered (w_eff/w_ffc at H~4096 are ~35 MiB each in bf16;
        # double-buffering blows v7x's 64 MiB VMEM) and raise vmem_limit_bytes.
        return pl.BlockSpec(shape, lambda b, c: zero)

    out, rnn = pl.pallas_call(
        kernel,
        out_shape=(
            jax.ShapeDtypeStruct((T, Bp, Op), jnp.float32),
            jax.ShapeDtypeStruct((T, Bp, Hp), jnp.bfloat16),  # bf16 activity: halves writeback
        ),
        grid_spec=pltpu.PrefetchScalarGridSpec(
            num_scalar_prefetch=0,
            grid=(NB, NC),  # (batch blocks [parallel], time chunks [sequential])
            in_specs=[
                pl.BlockSpec((TC, BB, Hp), lambda b, c: (c, b, 0)),   # pre-projected drive u
                const_spec((Hp, Hp)),   # w_eff^T
                const_spec((Hp, Hp)),   # w_fc^T @ w_f^T (folded feedback)
                const_spec((Hp, Op)),   # w_fc^T
                const_spec((1, Hp)),    # b_fc @ w_f^T
                const_spec((1, Op)),    # b_fc
                const_spec((1, Hp)),    # alpha
                const_spec((1, Hp)),    # alpha_s
            ],
            out_specs=[
                pl.BlockSpec((TC, BB, Op), lambda b, c: (c, b, 0)),
                pl.BlockSpec((TC, BB, Hp), lambda b, c: (c, b, 0)),
            ],
            scratch_shapes=[
                pltpu.VMEM((BB, Hp), jnp.float32),          # state
                pltpu.VMEM((BB, Hp), jnp.bfloat16),         # output (MXU operand dtype)
                pltpu.VMEM((BB, Hp), jnp.float32),          # synapse
                pltpu.VMEM((ring, BB, Hp), jnp.bfloat16),   # delayed-feedback ring buffer
                pltpu.VMEM((TC, BB, Hp), jnp.float32),      # f32 chunk activity (readout)
            ],
        ),
        compiler_params=pltpu.CompilerParams(
            dimension_semantics=("parallel", "arbitrary"),
            # ~0.4 MiB actually used here; explicit limit documents the knob to
            # re-derive at real H (and per generation: v7x has 64 MiB physical VMEM).
            vmem_limit_bytes=32 * 1024 * 1024),
    )(u_pad, w_eff_t, w_ffc, w_fc_t, b_fw, b_fc, alpha_p, alphas_p)

    return out[:, :B, :O], rnn[:, :B, :H].astype(jnp.float32)


# --------------------------- Reference (pure JAX) --------------------------- #
def asf_eirnn_reference(x, params, feedback_delay):
    T, B, _ = x.shape
    H = params["w_ih"].shape[0]
    O = params["w_fc"].shape[0]
    e_size = params["w_fc"].shape[1]
    w_eff = jnp.abs(params["w_hh"]) * params["mask"]
    alpha = params["alpha"].reshape(1, H).astype(jnp.float32)
    alpha_s = params["alpha_s"].reshape(1, H).astype(jnp.float32)

    state = jnp.zeros((B, H), jnp.float32)
    output = jnp.zeros((B, H), jnp.float32)
    syn = jnp.zeros((B, H), jnp.float32)
    outs, rnns = [], []
    for t in range(T):
        fb = jnp.zeros((B, O), jnp.float32) if t < feedback_delay else outs[t - feedback_delay]
        total = (x[t] @ params["w_ih"].T + params["b_ih"]
                 + output @ w_eff.T + params["b_hh"]
                 + fb @ params["w_f"].T + params["b_f"])
        s_new = alpha_s * (total - syn) + syn
        state = alpha * (jnp.tanh(s_new) - state) + state
        output = jnp.tanh(state)
        syn = s_new
        rnns.append(output)
        outs.append(output[:, :e_size] @ params["w_fc"].T + params["b_fc"])
    return jnp.stack(outs, axis=0), jnp.stack(rnns, axis=0)


# ---------------------------- Parameter setup ------------------------------- #
def init_params(key, input_size, hidden_size, output_size, e_prop=0.8):
    e_size = int(hidden_size * e_prop)
    i_size = hidden_size - e_size
    ks = jax.random.split(key, 12)

    def unif(k, shape, bound):
        return jax.random.uniform(k, shape, jnp.float32, -bound, bound)

    # input2h: Linear(input_size, hidden_size)
    b = 1.0 / math.sqrt(input_size)
    w_ih = unif(ks[0], (hidden_size, input_size), b)
    b_ih = unif(ks[1], (hidden_size,), b)

    # h2h: EIRecLinear(hidden_size) — kaiming-style uniform then scale E columns
    b = 1.0 / math.sqrt(hidden_size)
    w_hh = unif(ks[2], (hidden_size, hidden_size), b)
    w_hh = w_hh.at[:, :e_size].multiply(i_size / e_size)  # /= e_size / i_size
    b_hh = unif(ks[3], (hidden_size,), b)

    # E-I mask: +1 excitatory columns, -1 inhibitory, 0 on the diagonal
    sign = jnp.concatenate([jnp.ones((e_size,)), -jnp.ones((i_size,))]).astype(jnp.float32)
    mask = jnp.tile(sign[None, :], (hidden_size, 1))
    mask = mask * (1.0 - jnp.eye(hidden_size, dtype=jnp.float32))

    # fc: Linear(e_size, output_size)
    b = 1.0 / math.sqrt(e_size)
    w_fc = unif(ks[4], (output_size, e_size), b)
    b_fc = unif(ks[5], (output_size,), b)

    # f2h: Linear(output_size, hidden_size)
    b = 1.0 / math.sqrt(output_size)
    w_f = unif(ks[6], (hidden_size, output_size), b)
    b_f = unif(ks[7], (hidden_size,), b)

    # per-neuron alpha drawn from a set of unique values (as in AEIRNN);
    # alpha_s is a clone of alpha (as in ASFEIRNN).  (Kept float32; the PyTorch
    # code holds these in float64, which TPU does not support natively.)
    unique_alphas = jnp.array([0.1, 0.3, 0.6], jnp.float32)
    idx = jax.random.randint(ks[8], (1, hidden_size), 0, unique_alphas.shape[0])
    alpha = unique_alphas[idx]
    alpha_s = alpha

    return dict(w_ih=w_ih, b_ih=b_ih, w_hh=w_hh, b_hh=b_hh, mask=mask,
                w_fc=w_fc, b_fc=b_fc, w_f=w_f, b_f=b_f,
                alpha=alpha, alpha_s=alpha_s)


# --------------------------------- Main -------------------------------------- #
if __name__ == "__main__":
    input_size, hidden_size, output_size = 4, 32, 8
    seq_len, batch = 8, 2
    feedback_delay = int(50 * FS / 1000)  # = 3

    key = jax.random.PRNGKey(0)
    k_param, k_x = jax.random.split(key)
    params = init_params(k_param, input_size, hidden_size, output_size, e_prop=0.8)

    # input: (seq_len, batch, input_size), matching the PyTorch (L, N, C) convention
    x = jax.random.normal(k_x, (seq_len, batch, input_size), jnp.float32)

    out, rnn = asf_eirnn_forward(x, params, feedback_delay)
    out, rnn = jax.block_until_ready(out), jax.block_until_ready(rnn)

    out_ref, rnn_ref = asf_eirnn_reference(x, params, feedback_delay)

    assert out.shape == (seq_len, batch, output_size)
    assert rnn.shape == (seq_len, batch, hidden_size)
    np.testing.assert_allclose(np.asarray(out), np.asarray(out_ref), rtol=2e-2, atol=2e-2)
    np.testing.assert_allclose(np.asarray(rnn), np.asarray(rnn_ref), rtol=2e-2, atol=2e-2)

    print("KERNEL_OK")
</pallas_src>

<mosaic_0001>
module attributes {stable_mosaic.version = 11 : i64} {
  func.func @asf_eirnn_kernel(%arg0: i32, %arg1: i32, %arg2: memref<8x8x128xf32, #tpu.memory_space<vmem>>, %arg3: memref<128x128xbf16, #tpu.memory_space<vmem>>, %arg4: memref<128x128xbf16, #tpu.memory_space<vmem>>, %arg5: memref<128x128xbf16, #tpu.memory_space<vmem>>, %arg6: memref<1x128xf32, #tpu.memory_space<vmem>>, %arg7: memref<1x128xf32, #tpu.memory_space<vmem>>, %arg8: memref<1x128xf32, #tpu.memory_space<vmem>>, %arg9: memref<1x128xf32, #tpu.memory_space<vmem>>, %arg10: memref<8x8x128xf32, #tpu.memory_space<vmem>>, %arg11: memref<8x8x128xbf16, #tpu.memory_space<vmem>>, %arg12: memref<8x128xf32, #tpu.memory_space<vmem>>, %arg13: memref<8x128xbf16, #tpu.memory_space<vmem>>, %arg14: memref<8x128xf32, #tpu.memory_space<vmem>>, %arg15: memref<4x8x128xbf16, #tpu.memory_space<vmem>>, %arg16: memref<8x8x128xf32, #tpu.memory_space<vmem>>) attributes {dimension_semantics = [#tpu.dimension_semantics<parallel>, #tpu.dimension_semantics<arbitrary>], iteration_bounds = array<i64: 1, 1>, scalar_prefetch = 0 : i64, scratch_operands = 5 : i64, tpu.core_type = #tpu.core_type<tc>, window_params = [{transform_indices = @transform_0, window_bounds = array<i64: 8, 8, 128>}, {pipeline_mode = #tpu.pipeline_mode<synchronous>, transform_indices = @transform_1, window_bounds = array<i64: 128, 128>}, {pipeline_mode = #tpu.pipeline_mode<synchronous>, transform_indices = @transform_2, window_bounds = array<i64: 128, 128>}, {pipeline_mode = #tpu.pipeline_mode<synchronous>, transform_indices = @transform_3, window_bounds = array<i64: 128, 128>}, {pipeline_mode = #tpu.pipeline_mode<synchronous>, transform_indices = @transform_4, window_bounds = array<i64: 1, 128>}, {pipeline_mode = #tpu.pipeline_mode<synchronous>, transform_indices = @transform_5, window_bounds = array<i64: 1, 128>}, {pipeline_mode = #tpu.pipeline_mode<synchronous>, transform_indices = @transform_6, window_bounds = array<i64: 1, 128>}, {pipeline_mode = #tpu.pipeline_mode<synchronous>, transform_indices = @transform_7, window_bounds = array<i64: 1, 128>}, {transform_indices = @transform_8, window_bounds = array<i64: 8, 8, 128>}, {transform_indices = @transform_9, window_bounds = array<i64: 8, 8, 128>}]} {
    %c0_i32 = arith.constant 0 : i32
    %0 = arith.cmpi eq, %arg1, %c0_i32 : i32
    %1 = arith.extui %0 : i1 to i32
    %c0_i32_0 = arith.constant 0 : i32
    %2 = arith.cmpi ne, %1, %c0_i32_0 : i32
    scf.if %2 {
      %cst_157 = arith.constant 0.000000e+00 : f32
      %331 = vector.broadcast %cst_157 : f32 to vector<8x128xf32>
      %c0_158 = arith.constant 0 : index
      %c0_159 = arith.constant 0 : index
      %332 = vector.load %arg12[%c0_158, %c0_159] : memref<8x128xf32, #tpu.memory_space<vmem>>, vector<8x128xf32>
      tpu.vector_store %arg12[%c0_158, %c0_159], %331 {strides = array<i32>} : memref<8x128xf32, #tpu.memory_space<vmem>>, vector<8x128xf32>,
      %cst_160 = arith.constant 0.000000e+00 : bf16
      %333 = vector.broadcast %cst_160 : bf16 to vector<8x128xbf16>
      %c0_161 = arith.constant 0 : index
      %c0_162 = arith.constant 0 : index
      %334 = vector.load %arg13[%c0_161, %c0_162] : memref<8x128xbf16, #tpu.memory_space<vmem>>, vector<8x128xbf16>
      tpu.vector_store %arg13[%c0_161, %c0_162], %333 {strides = array<i32>} : memref<8x128xbf16, #tpu.memory_space<vmem>>, vector<8x128xbf16>,
      %cst_163 = arith.constant 0.000000e+00 : f32
      %335 = vector.broadcast %cst_163 : f32 to vector<8x128xf32>
      %c0_164 = arith.constant 0 : index
      %c0_165 = arith.constant 0 : index
      %336 = vector.load %arg14[%c0_164, %c0_165] : memref<8x128xf32, #tpu.memory_space<vmem>>, vector<8x128xf32>
      tpu.vector_store %arg14[%c0_164, %c0_165], %335 {strides = array<i32>} : memref<8x128xf32, #tpu.memory_space<vmem>>, vector<8x128xf32>,
      %cst_166 = arith.constant 0.000000e+00 : bf16
      %337 = vector.broadcast %cst_166 : bf16 to vector<4x8x128xbf16>
      %c0_167 = arith.constant 0 : index
      %c0_168 = arith.constant 0 : index
      %c0_169 = arith.constant 0 : index
      %338 = vector.load %arg15[%c0_167, %c0_168, %c0_169] : memref<4x8x128xbf16, #tpu.memory_space<vmem>>, vector<4x8x128xbf16>
      tpu.vector_store %arg15[%c0_167, %c0_168, %c0_169], %337 {strides = array<i32>} : memref<4x8x128xbf16, #tpu.memory_space<vmem>>, vector<4x8x128xbf16>,
    } else {
    }
    %c0 = arith.constant 0 : index
    %c0_1 = arith.constant 0 : index
    %3 = vector.load %arg3[%c0, %c0_1] : memref<128x128xbf16, #tpu.memory_space<vmem>>, vector<128x128xbf16>
    %c0_2 = arith.constant 0 : index
    %c0_3 = arith.constant 0 : index
    %4 = vector.load %arg4[%c0_2, %c0_3] : memref<128x128xbf16, #tpu.memory_space<vmem>>, vector<128x128xbf16>
    %c0_4 = arith.constant 0 : index
    %c0_5 = arith.constant 0 : index
    %5 = vector.load %arg8[%c0_4, %c0_5] : memref<1x128xf32, #tpu.memory_space<vmem>>, vector<1x128xf32>
    %c0_6 = arith.constant 0 : index
    %c0_7 = arith.constant 0 : index
    %6 = vector.load %arg9[%c0_6, %c0_7] : memref<1x128xf32, #tpu.memory_space<vmem>>, vector<1x128xf32>
    %c0_8 = arith.constant 0 : index
    %c0_9 = arith.constant 0 : index
    %7 = vector.load %arg6[%c0_8, %c0_9] : memref<1x128xf32, #tpu.memory_space<vmem>>, vector<1x128xf32>
    %c8_i32 = arith.constant 8 : i32
    %8 = arith.muli %arg1, %c8_i32 : i32
    %c0_10 = arith.constant 0 : index
    %c0_11 = arith.constant 0 : index
    %9 = vector.load %arg12[%c0_10, %c0_11] : memref<8x128xf32, #tpu.memory_space<vmem>>, vector<8x128xf32>
    %c0_12 = arith.constant 0 : index
    %c0_13 = arith.constant 0 : index
    %10 = vector.load %arg13[%c0_12, %c0_13] : memref<8x128xbf16, #tpu.memory_space<vmem>>, vector<8x128xbf16>
    %c0_14 = arith.constant 0 : index
    %c0_15 = arith.constant 0 : index
    %11 = vector.load %arg14[%c0_14, %c0_15] : memref<8x128xf32, #tpu.memory_space<vmem>>, vector<8x128xf32>
    %c0_i32_16 = arith.constant 0 : i32
    %12 = arith.addi %8, %c0_i32_16 : i32
    %c3_i32 = arith.constant 3 : i32
    %13 = arith.subi %12, %c3_i32 : i32
    %c3_i32_17 = arith.constant 3 : i32
    %14 = arith.andi %13, %c3_i32_17 : i32
    %15 = arith.index_cast %14 : i32 to index
    %c0_18 = arith.constant 0 : index
    %c0_19 = arith.constant 0 : index
    %16 = vector.load %arg15[%15, %c0_18, %c0_19] : memref<4x8x128xbf16, #tpu.memory_space<vmem>>, vector<1x8x128xbf16>
    %17 = vector.shape_cast %16 : vector<1x8x128xbf16> to vector<8x128xbf16>
    %c3_i32_20 = arith.constant 3 : i32
    %18 = arith.cmpi sge, %12, %c3_i32_20 : i32
    %cst = arith.constant dense<0.000000e+00> : vector<8x128xf32>
    %19 = tpu.matmul %17, %4, %cst {dimension_numbers = #tpu.dot_dimension_numbers<[1], [0], [0], [1], [0, 0, 1, 1], [], []>} : vector<8x128xbf16>, vector<128x128xbf16>, vector<8x128xf32> -> vector<8x128xf32>
    %20 = vector.broadcast %7 : vector<1x128xf32> to vector<8x128xf32>
    %21 = arith.addf %19, %20 : vector<8x128xf32>
    %cst_21 = arith.constant 0.000000e+00 : f32
    %22 = vector.broadcast %cst_21 : f32 to vector<8x128xf32>
    %23 = arith.select %18, %21, %22 : vector<8x128xf32>
    %24 = arith.index_cast %c0_i32_16 : i32 to index
    %c0_22 = arith.constant 0 : index
    %c0_23 = arith.constant 0 : index
    %25 = vector.load %arg2[%24, %c0_22, %c0_23] : memref<8x8x128xf32, #tpu.memory_space<vmem>>, vector<1x8x128xf32>
    %26 = vector.shape_cast %25 : vector<1x8x128xf32> to vector<8x128xf32>
    %cst_24 = arith.constant dense<0.000000e+00> : vector<8x128xf32>
    %27 = tpu.matmul %10, %3, %cst_24 {dimension_numbers = #tpu.dot_dimension_numbers<[1], [0], [0], [1], [0, 0, 1, 1], [], []>} : vector<8x128xbf16>, vector<128x128xbf16>, vector<8x128xf32> -> vector<8x128xf32>
    %28 = arith.addf %26, %27 : vector<8x128xf32>
    %29 = arith.addf %28, %23 : vector<8x128xf32>
    %30 = arith.subf %29, %11 : vector<8x128xf32>
    %31 = vector.broadcast %6 : vector<1x128xf32> to vector<8x128xf32>
    %32 = arith.mulf %31, %30 : vector<8x128xf32>
    %33 = arith.addf %32, %11 : vector<8x128xf32>
    %34 = math.tanh %33 : vector<8x128xf32>
    %35 = arith.subf %34, %9 : vector<8x128xf32>
    %36 = vector.broadcast %5 : vector<1x128xf32> to vector<8x128xf32>
    %37 = arith.mulf %36, %35 : vector<8x128xf32>
    %38 = arith.addf %37, %9 : vector<8x128xf32>
    %39 = math.tanh %38 : vector<8x128xf32>
    %40 = arith.truncf %39 : vector<8x128xf32> to vector<8x128xbf16>
    %c3_i32_25 = arith.constant 3 : i32
    %41 = arith.andi %12, %c3_i32_25 : i32
    %42 = arith.index_cast %41 : i32 to index
    %c0_26 = arith.constant 0 : index
    %c0_27 = arith.constant 0 : index
    %43 = vector.load %arg15[%42, %c0_26, %c0_27] : memref<4x8x128xbf16, #tpu.memory_space<vmem>>, vector<1x8x128xbf16>
    %44 = vector.shape_cast %43 : vector<1x8x128xbf16> to vector<8x128xbf16>
    %45 = vector.shape_cast %40 : vector<8x128xbf16> to vector<1x8x128xbf16>
    tpu.vector_store %arg15[%42, %c0_26, %c0_27], %45 {strides = array<i32>} : memref<4x8x128xbf16, #tpu.memory_space<vmem>>, vector<1x8x128xbf16>,
    %46 = arith.index_cast %c0_i32_16 : i32 to index
    %c0_28 = arith.constant 0 : index
    %c0_29 = arith.constant 0 : index
    %47 = vector.load %arg16[%46, %c0_28, %c0_29] : memref<8x8x128xf32, #tpu.memory_space<vmem>>, vector<1x8x128xf32>
    %48 = vector.shape_cast %47 : vector<1x8x128xf32> to vector<8x128xf32>
    %49 = vector.shape_cast %39 : vector<8x128xf32> to vector<1x8x128xf32>
    tpu.vector_store %arg16[%46, %c0_28, %c0_29], %49 {strides = array<i32>} : memref<8x8x128xf32, #tpu.memory_space<vmem>>, vector<1x8x128xf32>,
    %c1_i32 = arith.constant 1 : i32
    %50 = arith.addi %8, %c1_i32 : i32
    %c3_i32_30 = arith.constant 3 : i32
    %51 = arith.subi %50, %c3_i32_30 : i32
    %c3_i32_31 = arith.constant 3 : i32
    %52 = arith.andi %51, %c3_i32_31 : i32
    %53 = arith.index_cast %52 : i32 to index
    %c0_32 = arith.constant 0 : index
    %c0_33 = arith.constant 0 : index
    %54 = vector.load %arg15[%53, %c0_32, %c0_33] : memref<4x8x128xbf16, #tpu.memory_space<vmem>>, vector<1x8x128xbf16>
    %55 = vector.shape_cast %54 : vector<1x8x128xbf16> to vector<8x128xbf16>
    %c3_i32_34 = arith.constant 3 : i32
    %56 = arith.cmpi sge, %50, %c3_i32_34 : i32
    %cst_35 = arith.constant dense<0.000000e+00> : vector<8x128xf32>
    %57 = tpu.matmul %55, %4, %cst_35 {dimension_numbers = #tpu.dot_dimension_numbers<[1], [0], [0], [1], [0, 0, 1, 1], [], []>} : vector<8x128xbf16>, vector<128x128xbf16>, vector<8x128xf32> -> vector<8x128xf32>
    %58 = vector.broadcast %7 : vector<1x128xf32> to vector<8x128xf32>
    %59 = arith.addf %57, %58 : vector<8x128xf32>
    %cst_36 = arith.constant 0.000000e+00 : f32
    %60 = vector.broadcast %cst_36 : f32 to vector<8x128xf32>
    %61 = arith.select %56, %59, %60 : vector<8x128xf32>
    %62 = arith.index_cast %c1_i32 : i32 to index
    %c0_37 = arith.constant 0 : index
    %c0_38 = arith.constant 0 : index
    %63 = vector.load %arg2[%62, %c0_37, %c0_38] : memref<8x8x128xf32, #tpu.memory_space<vmem>>, vector<1x8x128xf32>
    %64 = vector.shape_cast %63 : vector<1x8x128xf32> to vector<8x128xf32>
    %cst_39 = arith.constant dense<0.000000e+00> : vector<8x128xf32>
    %65 = tpu.matmul %40, %3, %cst_39 {dimension_numbers = #tpu.dot_dimension_numbers<[1], [0], [0], [1], [0, 0, 1, 1], [], []>} : vector<8x128xbf16>, vector<128x128xbf16>, vector<8x128xf32> -> vector<8x128xf32>
    %66 = arith.addf %64, %65 : vector<8x128xf32>
    %67 = arith.addf %66, %61 : vector<8x128xf32>
    %68 = arith.subf %67, %33 : vector<8x128xf32>
    %69 = vector.broadcast %6 : vector<1x128xf32> to vector<8x128xf32>
    %70 = arith.mulf %69, %68 : vector<8x128xf32>
    %71 = arith.addf %70, %33 : vector<8x128xf32>
    %72 = math.tanh %71 : vector<8x128xf32>
    %73 = arith.subf %72, %38 : vector<8x128xf32>
    %74 = vector.broadcast %5 : vector<1x128xf32> to vector<8x128xf32>
    %75 = arith.mulf %74, %73 : vector<8x128xf32>
    %76 = arith.addf %75, %38 : vector<8x128xf32>
    %77 = math.tanh %76 : vector<8x128xf32>
    %78 = arith.truncf %77 : vector<8x128xf32> to vector<8x128xbf16>
    %c3_i32_40 = arith.constant 3 : i32
    %79 = arith.andi %50, %c3_i32_40 : i32
    %80 = arith.index_cast %79 : i32 to index
    %c0_41 = arith.constant 0 : index
    %c0_42 = arith.constant 0 : index
    %81 = vector.load %arg15[%80, %c0_41, %c0_42] : memref<4x8x128xbf16, #tpu.memory_space<vmem>>, vector<1x8x128xbf16>
    %82 = vector.shape_cast %81 : vector<1x8x128xbf16> to vector<8x128xbf16>
    %83 = vector.shape_cast %78 : vector<8x128xbf16> to vector<1x8x128xbf16>
    tpu.vector_store %arg15[%80, %c0_41, %c0_42], %83 {strides = array<i32>} : memref<4x8x128xbf16, #tpu.memory_space<vmem>>, vector<1x8x128xbf16>,
    %84 = arith.index_cast %c1_i32 : i32 to index
    %c0_43 = arith.constant 0 : index
    %c0_44 = arith.constant 0 : index
    %85 = vector.load %arg16[%84, %c0_43, %c0_44] : memref<8x8x128xf32, #tpu.memory_space<vmem>>, vector<1x8x128xf32>
    %86 = vector.shape_cast %85 : vector<1x8x128xf32> to vector<8x128xf32>
    %87 = vector.shape_cast %77 : vector<8x128xf32> to vector<1x8x128xf32>
    tpu.vector_store %arg16[%84, %c0_43, %c0_44], %87 {strides = array<i32>} : memref<8x8x128xf32, #tpu.memory_space<vmem>>, vector<1x8x128xf32>,
    %c2_i32 = arith.constant 2 : i32
    %88 = arith.addi %8, %c2_i32 : i32
    %c3_i32_45 = arith.constant 3 : i32
    %89 = arith.subi %88, %c3_i32_45 : i32
    %c3_i32_46 = arith.constant 3 : i32
    %90 = arith.andi %89, %c3_i32_46 : i32
    %91 = arith.index_cast %90 : i32 to index
    %c0_47 = arith.constant 0 : index
    %c0_48 = arith.constant 0 : index
    %92 = vector.load %arg15[%91, %c0_47, %c0_48] : memref<4x8x128xbf16, #tpu.memory_space<vmem>>, vector<1x8x128xbf16>
    %93 = vector.shape_cast %92 : vector<1x8x128xbf16> to vector<8x128xbf16>
    %c3_i32_49 = arith.constant 3 : i32
    %94 = arith.cmpi sge, %88, %c3_i32_49 : i32
    %cst_50 = arith.constant dense<0.000000e+00> : vector<8x128xf32>
    %95 = tpu.matmul %93, %4, %cst_50 {dimension_numbers = #tpu.dot_dimension_numbers<[1], [0], [0], [1], [0, 0, 1, 1], [], []>} : vector<8x128xbf16>, vector<128x128xbf16>, vector<8x128xf32> -> vector<8x128xf32>
    %96 = vector.broadcast %7 : vector<1x128xf32> to vector<8x128xf32>
    %97 = arith.addf %95, %96 : vector<8x128xf32>
    %cst_51 = arith.constant 0.000000e+00 : f32
    %98 = vector.broadcast %cst_51 : f32 to vector<8x128xf32>
    %99 = arith.select %94, %97, %98 : vector<8x128xf32>
    %100 = arith.index_cast %c2_i32 : i32 to index
    %c0_52 = arith.constant 0 : index
    %c0_53 = arith.constant 0 : index
    %101 = vector.load %arg2[%100, %c0_52, %c0_53] : memref<8x8x128xf32, #tpu.memory_space<vmem>>, vector<1x8x128xf32>
    %102 = vector.shape_cast %101 : vector<1x8x128xf32> to vector<8x128xf32>
    %cst_54 = arith.constant dense<0.000000e+00> : vector<8x128xf32>
    %103 = tpu.matmul %78, %3, %cst_54 {dimension_numbers = #tpu.dot_dimension_numbers<[1], [0], [0], [1], [0, 0, 1, 1], [], []>} : vector<8x128xbf16>, vector<128x128xbf16>, vector<8x128xf32> -> vector<8x128xf32>
    %104 = arith.addf %102, %103 : vector<8x128xf32>
    %105 = arith.addf %104, %99 : vector<8x128xf32>
    %106 = arith.subf %105, %71 : vector<8x128xf32>
    %107 = vector.broadcast %6 : vector<1x128xf32> to vector<8x128xf32>
    %108 = arith.mulf %107, %106 : vector<8x128xf32>
    %109 = arith.addf %108, %71 : vector<8x128xf32>
    %110 = math.tanh %109 : vector<8x128xf32>
    %111 = arith.subf %110, %76 : vector<8x128xf32>
    %112 = vector.broadcast %5 : vector<1x128xf32> to vector<8x128xf32>
    %113 = arith.mulf %112, %111 : vector<8x128xf32>
    %114 = arith.addf %113, %76 : vector<8x128xf32>
    %115 = math.tanh %114 : vector<8x128xf32>
    %116 = arith.truncf %115 : vector<8x128xf32> to vector<8x128xbf16>
    %c3_i32_55 = arith.constant 3 : i32
    %117 = arith.andi %88, %c3_i32_55 : i32
    %118 = arith.index_cast %117 : i32 to index
    %c0_56 = arith.constant 0 : index
    %c0_57 = arith.constant 0 : index
    %119 = vector.load %arg15[%118, %c0_56, %c0_57] : memref<4x8x128xbf16, #tpu.memory_space<vmem>>, vector<1x8x128xbf16>
    %120 = vector.shape_cast %119 : vector<1x8x128xbf16> to vector<8x128xbf16>
    %121 = vector.shape_cast %116 : vector<8x128xbf16> to vector<1x8x128xbf16>
    tpu.vector_store %arg15[%118, %c0_56, %c0_57], %121 {strides = array<i32>} : memref<4x8x128xbf16, #tpu.memory_space<vmem>>, vector<1x8x128xbf16>,
    %122 = arith.index_cast %c2_i32 : i32 to index
    %c0_58 = arith.constant 0 : index
    %c0_59 = arith.constant 0 : index
    %123 = vector.load %arg16[%122, %c0_58, %c0_59] : memref<8x8x128xf32, #tpu.memory_space<vmem>>, vector<1x8x128xf32>
    %124 = vector.shape_cast %123 : vector<1x8x128xf32> to vector<8x128xf32>
    %125 = vector.shape_cast %115 : vector<8x128xf32> to vector<1x8x128xf32>
    tpu.vector_store %arg16[%122, %c0_58, %c0_59], %125 {strides = array<i32>} : memref<8x8x128xf32, #tpu.memory_space<vmem>>, vector<1x8x128xf32>,
    %c3_i32_60 = arith.constant 3 : i32
    %126 = arith.addi %8, %c3_i32_60 : i32
    %c3_i32_61 = arith.constant 3 : i32
    %127 = arith.subi %126, %c3_i32_61 : i32
    %c3_i32_62 = arith.constant 3 : i32
    %128 = arith.andi %127, %c3_i32_62 : i32
    %129 = arith.index_cast %128 : i32 to index
    %c0_63 = arith.constant 0 : index
    %c0_64 = arith.constant 0 : index
    %130 = vector.load %arg15[%129, %c0_63, %c0_64] : memref<4x8x128xbf16, #tpu.memory_space<vmem>>, vector<1x8x128xbf16>
    %131 = vector.shape_cast %130 : vector<1x8x128xbf16> to vector<8x128xbf16>
    %c3_i32_65 = arith.constant 3 : i32
    %132 = arith.cmpi sge, %126, %c3_i32_65 : i32
    %cst_66 = arith.constant dense<0.000000e+00> : vector<8x128xf32>
    %133 = tpu.matmul %131, %4, %cst_66 {dimension_numbers = #tpu.dot_dimension_numbers<[1], [0], [0], [1], [0, 0, 1, 1], [], []>} : vector<8x128xbf16>, vector<128x128xbf16>, vector<8x128xf32> -> vector<8x128xf32>
    %134 = vector.broadcast %7 : vector<1x128xf32> to vector<8x128xf32>
    %135 = arith.addf %133, %134 : vector<8x128xf32>
    %cst_67 = arith.constant 0.000000e+00 : f32
    %136 = vector.broadcast %cst_67 : f32 to vector<8x128xf32>
    %137 = arith.select %132, %135, %136 : vector<8x128xf32>
    %138 = arith.index_cast %c3_i32_60 : i32 to index
    %c0_68 = arith.constant 0 : index
    %c0_69 = arith.constant 0 : index
    %139 = vector.load %arg2[%138, %c0_68, %c0_69] : memref<8x8x128xf32, #tpu.memory_space<vmem>>, vector<1x8x128xf32>
    %140 = vector.shape_cast %139 : vector<1x8x128xf32> to vector<8x128xf32>
    %cst_70 = arith.constant dense<0.000000e+00> : vector<8x128xf32>
    %141 = tpu.matmul %116, %3, %cst_70 {dimension_numbers = #tpu.dot_dimension_numbers<[1], [0], [0], [1], [0, 0, 1, 1], [], []>} : vector<8x128xbf16>, vector<128x128xbf16>, vector<8x128xf32> -> vector<8x128xf32>
    %142 = arith.addf %140, %141 : vector<8x128xf32>
    %143 = arith.addf %142, %137 : vector<8x128xf32>
    %144 = arith.subf %143, %109 : vector<8x128xf32>
    %145 = vector.broadcast %6 : vector<1x128xf32> to vector<8x128xf32>
    %146 = arith.mulf %145, %144 : vector<8x128xf32>
    %147 = arith.addf %146, %109 : vector<8x128xf32>
    %148 = math.tanh %147 : vector<8x128xf32>
    %149 = arith.subf %148, %114 : vector<8x128xf32>
    %150 = vector.broadcast %5 : vector<1x128xf32> to vector<8x128xf32>
    %151 = arith.mulf %150, %149 : vector<8x128xf32>
    %152 = arith.addf %151, %114 : vector<8x128xf32>
    %153 = math.tanh %152 : vector<8x128xf32>
    %154 = arith.truncf %153 : vector<8x128xf32> to vector<8x128xbf16>
    %c3_i32_71 = arith.constant 3 : i32
    %155 = arith.andi %126, %c3_i32_71 : i32
    %156 = arith.index_cast %155 : i32 to index
    %c0_72 = arith.constant 0 : index
    %c0_73 = arith.constant 0 : index
    %157 = vector.load %arg15[%156, %c0_72, %c0_73] : memref<4x8x128xbf16, #tpu.memory_space<vmem>>, vector<1x8x128xbf16>
    %158 = vector.shape_cast %157 : vector<1x8x128xbf16> to vector<8x128xbf16>
    %159 = vector.shape_cast %154 : vector<8x128xbf16> to vector<1x8x128xbf16>
    tpu.vector_store %arg15[%156, %c0_72, %c0_73], %159 {strides = array<i32>} : memref<4x8x128xbf16, #tpu.memory_space<vmem>>, vector<1x8x128xbf16>,
    %160 = arith.index_cast %c3_i32_60 : i32 to index
    %c0_74 = arith.constant 0 : index
    %c0_75 = arith.constant 0 : index
    %161 = vector.load %arg16[%160, %c0_74, %c0_75] : memref<8x8x128xf32, #tpu.memory_space<vmem>>, vector<1x8x128xf32>
    %162 = vector.shape_cast %161 : vector<1x8x128xf32> to vector<8x128xf32>
    %163 = vector.shape_cast %153 : vector<8x128xf32> to vector<1x8x128xf32>
    tpu.vector_store %arg16[%160, %c0_74, %c0_75], %163 {strides = array<i32>} : memref<8x8x128xf32, #tpu.memory_space<vmem>>, vector<1x8x128xf32>,
    %c4_i32 = arith.constant 4 : i32
    %164 = arith.addi %8, %c4_i32 : i32
    %c3_i32_76 = arith.constant 3 : i32
    %165 = arith.subi %164, %c3_i32_76 : i32
    %c3_i32_77 = arith.constant 3 : i32
    %166 = arith.andi %165, %c3_i32_77 : i32
    %167 = arith.index_cast %166 : i32 to index
    %c0_78 = arith.constant 0 : index
    %c0_79 = arith.constant 0 : index
    %168 = vector.load %arg15[%167, %c0_78, %c0_79] : memref<4x8x128xbf16, #tpu.memory_space<vmem>>, vector<1x8x128xbf16>
    %169 = vector.shape_cast %168 : vector<1x8x128xbf16> to vector<8x128xbf16>
    %c3_i32_80 = arith.constant 3 : i32
    %170 = arith.cmpi sge, %164, %c3_i32_80 : i32
    %cst_81 = arith.constant dense<0.000000e+00> : vector<8x128xf32>
    %171 = tpu.matmul %169, %4, %cst_81 {dimension_numbers = #tpu.dot_dimension_numbers<[1], [0], [0], [1], [0, 0, 1, 1], [], []>} : vector<8x128xbf16>, vector<128x128xbf16>, vector<8x128xf32> -> vector<8x128xf32>
    %172 = vector.broadcast %7 : vector<1x128xf32> to vector<8x128xf32>
    %173 = arith.addf %171, %172 : vector<8x128xf32>
    %cst_82 = arith.constant 0.000000e+00 : f32
    %174 = vector.broadcast %cst_82 : f32 to vector<8x128xf32>
    %175 = arith.select %170, %173, %174 : vector<8x128xf32>
    %176 = arith.index_cast %c4_i32 : i32 to index
    %c0_83 = arith.constant 0 : index
    %c0_84 = arith.constant 0 : index
    %177 = vector.load %arg2[%176, %c0_83, %c0_84] : memref<8x8x128xf32, #tpu.memory_space<vmem>>, vector<1x8x128xf32>
    %178 = vector.shape_cast %177 : vector<1x8x128xf32> to vector<8x128xf32>
    %cst_85 = arith.constant dense<0.000000e+00> : vector<8x128xf32>
    %179 = tpu.matmul %154, %3, %cst_85 {dimension_numbers = #tpu.dot_dimension_numbers<[1], [0], [0], [1], [0, 0, 1, 1], [], []>} : vector<8x128xbf16>, vector<128x128xbf16>, vector<8x128xf32> -> vector<8x128xf32>
    %180 = arith.addf %178, %179 : vector<8x128xf32>
    %181 = arith.addf %180, %175 : vector<8x128xf32>
    %182 = arith.subf %181, %147 : vector<8x128xf32>
    %183 = vector.broadcast %6 : vector<1x128xf32> to vector<8x128xf32>
    %184 = arith.mulf %183, %182 : vector<8x128xf32>
    %185 = arith.addf %184, %147 : vector<8x128xf32>
    %186 = math.tanh %185 : vector<8x128xf32>
    %187 = arith.subf %186, %152 : vector<8x128xf32>
    %188 = vector.broadcast %5 : vector<1x128xf32> to vector<8x128xf32>
    %189 = arith.mulf %188, %187 : vector<8x128xf32>
    %190 = arith.addf %189, %152 : vector<8x128xf32>
    %191 = math.tanh %190 : vector<8x128xf32>
    %192 = arith.truncf %191 : vector<8x128xf32> to vector<8x128xbf16>
    %c3_i32_86 = arith.constant 3 : i32
    %193 = arith.andi %164, %c3_i32_86 : i32
    %194 = arith.index_cast %193 : i32 to index
    %c0_87 = arith.constant 0 : index
    %c0_88 = arith.constant 0 : index
    %195 = vector.load %arg15[%194, %c0_87, %c0_88] : memref<4x8x128xbf16, #tpu.memory_space<vmem>>, vector<1x8x128xbf16>
    %196 = vector.shape_cast %195 : vector<1x8x128xbf16> to vector<8x128xbf16>
    %197 = vector.shape_cast %192 : vector<8x128xbf16> to vector<1x8x128xbf16>
    tpu.vector_store %arg15[%194, %c0_87, %c0_88], %197 {strides = array<i32>} : memref<4x8x128xbf16, #tpu.memory_space<vmem>>, vector<1x8x128xbf16>,
    %198 = arith.index_cast %c4_i32 : i32 to index
    %c0_89 = arith.constant 0 : index
    %c0_90 = arith.constant 0 : index
    %199 = vector.load %arg16[%198, %c0_89, %c0_90] : memref<8x8x128xf32, #tpu.memory_space<vmem>>, vector<1x8x128xf32>
    %200 = vector.shape_cast %199 : vector<1x8x128xf32> to vector<8x128xf32>
    %201 = vector.shape_cast %191 : vector<8x128xf32> to vector<1x8x128xf32>
    tpu.vector_store %arg16[%198, %c0_89, %c0_90], %201 {strides = array<i32>} : memref<8x8x128xf32, #tpu.memory_space<vmem>>, vector<1x8x128xf32>,
    %c5_i32 = arith.constant 5 : i32
    %202 = arith.addi %8, %c5_i32 : i32
    %c3_i32_91 = arith.constant 3 : i32
    %203 = arith.subi %202, %c3_i32_91 : i32
    %c3_i32_92 = arith.constant 3 : i32
    %204 = arith.andi %203, %c3_i32_92 : i32
    %205 = arith.index_cast %204 : i32 to index
    %c0_93 = arith.constant 0 : index
    %c0_94 = arith.constant 0 : index
    %206 = vector.load %arg15[%205, %c0_93, %c0_94] : memref<4x8x128xbf16, #tpu.memory_space<vmem>>, vector<1x8x128xbf16>
    %207 = vector.shape_cast %206 : vector<1x8x128xbf16> to vector<8x128xbf16>
    %c3_i32_95 = arith.constant 3 : i32
    %208 = arith.cmpi sge, %202, %c3_i32_95 : i32
    %cst_96 = arith.constant dense<0.000000e+00> : vector<8x128xf32>
    %209 = tpu.matmul %207, %4, %cst_96 {dimension_numbers = #tpu.dot_dimension_numbers<[1], [0], [0], [1], [0, 0, 1, 1], [], []>} : vector<8x128xbf16>, vector<128x128xbf16>, vector<8x128xf32> -> vector<8x128xf32>
    %210 = vector.broadcast %7 : vector<1x128xf32> to vector<8x128xf32>
    %211 = arith.addf %209, %210 : vector<8x128xf32>
    %cst_97 = arith.constant 0.000000e+00 : f32
    %212 = vector.broadcast %cst_97 : f32 to vector<8x128xf32>
    %213 = arith.select %208, %211, %212 : vector<8x128xf32>
    %214 = arith.index_cast %c5_i32 : i32 to index
    %c0_98 = arith.constant 0 : index
    %c0_99 = arith.constant 0 : index
    %215 = vector.load %arg2[%214, %c0_98, %c0_99] : memref<8x8x128xf32, #tpu.memory_space<vmem>>, vector<1x8x128xf32>
    %216 = vector.shape_cast %215 : vector<1x8x128xf32> to vector<8x128xf32>
    %cst_100 = arith.constant dense<0.000000e+00> : vector<8x128xf32>
    %217 = tpu.matmul %192, %3, %cst_100 {dimension_numbers = #tpu.dot_dimension_numbers<[1], [0], [0], [1], [0, 0, 1, 1], [], []>} : vector<8x128xbf16>, vector<128x128xbf16>, vector<8x128xf32> -> vector<8x128xf32>
    %218 = arith.addf %216, %217 : vector<8x128xf32>
    %219 = arith.addf %218, %213 : vector<8x128xf32>
    %220 = arith.subf %219, %185 : vector<8x128xf32>
    %221 = vector.broadcast %6 : vector<1x128xf32> to vector<8x128xf32>
    %222 = arith.mulf %221, %220 : vector<8x128xf32>
    %223 = arith.addf %222, %185 : vector<8x128xf32>
    %224 = math.tanh %223 : vector<8x128xf32>
    %225 = arith.subf %224, %190 : vector<8x128xf32>
    %226 = vector.broadcast %5 : vector<1x128xf32> to vector<8x128xf32>
    %227 = arith.mulf %226, %225 : vector<8x128xf32>
    %228 = arith.addf %227, %190 : vector<8x128xf32>
    %229 = math.tanh %228 : vector<8x128xf32>
    %230 = arith.truncf %229 : vector<8x128xf32> to vector<8x128xbf16>
    %c3_i32_101 = arith.constant 3 : i32
    %231 = arith.andi %202, %c3_i32_101 : i32
    %232 = arith.index_cast %231 : i32 to index
    %c0_102 = arith.constant 0 : index
    %c0_103 = arith.constant 0 : index
    %233 = vector.load %arg15[%232, %c0_102, %c0_103] : memref<4x8x128xbf16, #tpu.memory_space<vmem>>, vector<1x8x128xbf16>
    %234 = vector.shape_cast %233 : vector<1x8x128xbf16> to vector<8x128xbf16>
    %235 = vector.shape_cast %230 : vector<8x128xbf16> to vector<1x8x128xbf16>
    tpu.vector_store %arg15[%232, %c0_102, %c0_103], %235 {strides = array<i32>} : memref<4x8x128xbf16, #tpu.memory_space<vmem>>, vector<1x8x128xbf16>,
    %236 = arith.index_cast %c5_i32 : i32 to index
    %c0_104 = arith.constant 0 : index
    %c0_105 = arith.constant 0 : index
    %237 = vector.load %arg16[%236, %c0_104, %c0_105] : memref<8x8x128xf32, #tpu.memory_space<vmem>>, vector<1x8x128xf32>
    %238 = vector.shape_cast %237 : vector<1x8x128xf32> to vector<8x128xf32>
    %239 = vector.shape_cast %229 : vector<8x128xf32> to vector<1x8x128xf32>
    tpu.vector_store %arg16[%236, %c0_104, %c0_105], %239 {strides = array<i32>} : memref<8x8x128xf32, #tpu.memory_space<vmem>>, vector<1x8x128xf32>,
    %c6_i32 = arith.constant 6 : i32
    %240 = arith.addi %8, %c6_i32 : i32
    %c3_i32_106 = arith.constant 3 : i32
    %241 = arith.subi %240, %c3_i32_106 : i32
    %c3_i32_107 = arith.constant 3 : i32
    %242 = arith.andi %241, %c3_i32_107 : i32
    %243 = arith.index_cast %242 : i32 to index
    %c0_108 = arith.constant 0 : index
    %c0_109 = arith.constant 0 : index
    %244 = vector.load %arg15[%243, %c0_108, %c0_109] : memref<4x8x128xbf16, #tpu.memory_space<vmem>>, vector<1x8x128xbf16>
    %245 = vector.shape_cast %244 : vector<1x8x128xbf16> to vector<8x128xbf16>
    %c3_i32_110 = arith.constant 3 : i32
    %246 = arith.cmpi sge, %240, %c3_i32_110 : i32
    %cst_111 = arith.constant dense<0.000000e+00> : vector<8x128xf32>
    %247 = tpu.matmul %245, %4, %cst_111 {dimension_numbers = #tpu.dot_dimension_numbers<[1], [0], [0], [1], [0, 0, 1, 1], [], []>} : vector<8x128xbf16>, vector<128x128xbf16>, vector<8x128xf32> -> vector<8x128xf32>
    %248 = vector.broadcast %7 : vector<1x128xf32> to vector<8x128xf32>
    %249 = arith.addf %247, %248 : vector<8x128xf32>
    %cst_112 = arith.constant 0.000000e+00 : f32
    %250 = vector.broadcast %cst_112 : f32 to vector<8x128xf32>
    %251 = arith.select %246, %249, %250 : vector<8x128xf32>
    %252 = arith.index_cast %c6_i32 : i32 to index
    %c0_113 = arith.constant 0 : index
    %c0_114 = arith.constant 0 : index
    %253 = vector.load %arg2[%252, %c0_113, %c0_114] : memref<8x8x128xf32, #tpu.memory_space<vmem>>, vector<1x8x128xf32>
    %254 = vector.shape_cast %253 : vector<1x8x128xf32> to vector<8x128xf32>
    %cst_115 = arith.constant dense<0.000000e+00> : vector<8x128xf32>
    %255 = tpu.matmul %230, %3, %cst_115 {dimension_numbers = #tpu.dot_dimension_numbers<[1], [0], [0], [1], [0, 0, 1, 1], [], []>} : vector<8x128xbf16>, vector<128x128xbf16>, vector<8x128xf32> -> vector<8x128xf32>
    %256 = arith.addf %254, %255 : vector<8x128xf32>
    %257 = arith.addf %256, %251 : vector<8x128xf32>
    %258 = arith.subf %257, %223 : vector<8x128xf32>
    %259 = vector.broadcast %6 : vector<1x128xf32> to vector<8x128xf32>
    %260 = arith.mulf %259, %258 : vector<8x128xf32>
    %261 = arith.addf %260, %223 : vector<8x128xf32>
    %262 = math.tanh %261 : vector<8x128xf32>
    %263 = arith.subf %262, %228 : vector<8x128xf32>
    %264 = vector.broadcast %5 : vector<1x128xf32> to vector<8x128xf32>
    %265 = arith.mulf %264, %263 : vector<8x128xf32>
    %266 = arith.addf %265, %228 : vector<8x128xf32>
    %267 = math.tanh %266 : vector<8x128xf32>
    %268 = arith.truncf %267 : vector<8x128xf32> to vector<8x128xbf16>
    %c3_i32_116 = arith.constant 3 : i32
    %269 = arith.andi %240, %c3_i32_116 : i32
    %270 = arith.index_cast %269 : i32 to index
    %c0_117 = arith.constant 0 : index
    %c0_118 = arith.constant 0 : index
    %271 = vector.load %arg15[%270, %c0_117, %c0_118] : memref<4x8x128xbf16, #tpu.memory_space<vmem>>, vector<1x8x128xbf16>
    %272 = vector.shape_cast %271 : vector<1x8x128xbf16> to vector<8x128xbf16>
    %273 = vector.shape_cast %268 : vector<8x128xbf16> to vector<1x8x128xbf16>
    tpu.vector_store %arg15[%270, %c0_117, %c0_118], %273 {strides = array<i32>} : memref<4x8x128xbf16, #tpu.memory_space<vmem>>, vector<1x8x128xbf16>,
    %274 = arith.index_cast %c6_i32 : i32 to index
    %c0_119 = arith.constant 0 : index
    %c0_120 = arith.constant 0 : index
    %275 = vector.load %arg16[%274, %c0_119, %c0_120] : memref<8x8x128xf32, #tpu.memory_space<vmem>>, vector<1x8x128xf32>
    %276 = vector.shape_cast %275 : vector<1x8x128xf32> to vector<8x128xf32>
    %277 = vector.shape_cast %267 : vector<8x128xf32> to vector<1x8x128xf32>
    tpu.vector_store %arg16[%274, %c0_119, %c0_120], %277 {strides = array<i32>} : memref<8x8x128xf32, #tpu.memory_space<vmem>>, vector<1x8x128xf32>,
    %c7_i32 = arith.constant 7 : i32
    %278 = arith.addi %8, %c7_i32 : i32
    %c3_i32_121 = arith.constant 3 : i32
    %279 = arith.subi %278, %c3_i32_121 : i32
    %c3_i32_122 = arith.constant 3 : i32
    %280 = arith.andi %279, %c3_i32_122 : i32
    %281 = arith.index_cast %280 : i32 to index
    %c0_123 = arith.constant 0 : index
    %c0_124 = arith.constant 0 : index
    %282 = vector.load %arg15[%281, %c0_123, %c0_124] : memref<4x8x128xbf16, #tpu.memory_space<vmem>>, vector<1x8x128xbf16>
    %283 = vector.shape_cast %282 : vector<1x8x128xbf16> to vector<8x128xbf16>
    %c3_i32_125 = arith.constant 3 : i32
    %284 = arith.cmpi sge, %278, %c3_i32_125 : i32
    %cst_126 = arith.constant dense<0.000000e+00> : vector<8x128xf32>
    %285 = tpu.matmul %283, %4, %cst_126 {dimension_numbers = #tpu.dot_dimension_numbers<[1], [0], [0], [1], [0, 0, 1, 1], [], []>} : vector<8x128xbf16>, vector<128x128xbf16>, vector<8x128xf32> -> vector<8x128xf32>
    %286 = vector.broadcast %7 : vector<1x128xf32> to vector<8x128xf32>
    %287 = arith.addf %285, %286 : vector<8x128xf32>
    %cst_127 = arith.constant 0.000000e+00 : f32
    %288 = vector.broadcast %cst_127 : f32 to vector<8x128xf32>
    %289 = arith.select %284, %287, %288 : vector<8x128xf32>
    %290 = arith.index_cast %c7_i32 : i32 to index
    %c0_128 = arith.constant 0 : index
    %c0_129 = arith.constant 0 : index
    %291 = vector.load %arg2[%290, %c0_128, %c0_129] : memref<8x8x128xf32, #tpu.memory_space<vmem>>, vector<1x8x128xf32>
    %292 = vector.shape_cast %291 : vector<1x8x128xf32> to vector<8x128xf32>
    %cst_130 = arith.constant dense<0.000000e+00> : vector<8x128xf32>
    %293 = tpu.matmul %268, %3, %cst_130 {dimension_numbers = #tpu.dot_dimension_numbers<[1], [0], [0], [1], [0, 0, 1, 1], [], []>} : vector<8x128xbf16>, vector<128x128xbf16>, vector<8x128xf32> -> vector<8x128xf32>
    %294 = arith.addf %292, %293 : vector<8x128xf32>
    %295 = arith.addf %294, %289 : vector<8x128xf32>
    %296 = arith.subf %295, %261 : vector<8x128xf32>
    %297 = vector.broadcast %6 : vector<1x128xf32> to vector<8x128xf32>
    %298 = arith.mulf %297, %296 : vector<8x128xf32>
    %299 = arith.addf %298, %261 : vector<8x128xf32>
    %300 = math.tanh %299 : vector<8x128xf32>
    %301 = arith.subf %300, %266 : vector<8x128xf32>
    %302 = vector.broadcast %5 : vector<1x128xf32> to vector<8x128xf32>
    %303 = arith.mulf %302, %301 : vector<8x128xf32>
    %304 = arith.addf %303, %266 : vector<8x128xf32>
    %305 = math.tanh %304 : vector<8x128xf32>
    %306 = arith.truncf %305 : vector<8x128xf32> to vector<8x128xbf16>
    %c3_i32_131 = arith.constant 3 : i32
    %307 = arith.andi %278, %c3_i32_131 : i32
    %308 = arith.index_cast %307 : i32 to index
    %c0_132 = arith.constant 0 : index
    %c0_133 = arith.constant 0 : index
    %309 = vector.load %arg15[%308, %c0_132, %c0_133] : memref<4x8x128xbf16, #tpu.memory_space<vmem>>, vector<1x8x128xbf16>
    %310 = vector.shape_cast %309 : vector<1x8x128xbf16> to vector<8x128xbf16>
    %311 = vector.shape_cast %306 : vector<8x128xbf16> to vector<1x8x128xbf16>
    tpu.vector_store %arg15[%308, %c0_132, %c0_133], %311 {strides = array<i32>} : memref<4x8x128xbf16, #tpu.memory_space<vmem>>, vector<1x8x128xbf16>,
    %312 = arith.index_cast %c7_i32 : i32 to index
    %c0_134 = arith.constant 0 : index
    %c0_135 = arith.constant 0 : index
    %313 = vector.load %arg16[%312, %c0_134, %c0_135] : memref<8x8x128xf32, #tpu.memory_space<vmem>>, vector<1x8x128xf32>
    %314 = vector.shape_cast %313 : vector<1x8x128xf32> to vector<8x128xf32>
    %315 = vector.shape_cast %305 : vector<8x128xf32> to vector<1x8x128xf32>
    tpu.vector_store %arg16[%312, %c0_134, %c0_135], %315 {strides = array<i32>} : memref<8x8x128xf32, #tpu.memory_space<vmem>>, vector<1x8x128xf32>,
    %c8_i32_136 = arith.constant 8 : i32
    %c0_137 = arith.constant 0 : index
    %c0_138 = arith.constant 0 : index
    %316 = vector.load %arg12[%c0_137, %c0_138] : memref<8x128xf32, #tpu.memory_space<vmem>>, vector<8x128xf32>
    tpu.vector_store %arg12[%c0_137, %c0_138], %304 {strides = array<i32>} : memref<8x128xf32, #tpu.memory_space<vmem>>, vector<8x128xf32>,
    %c0_139 = arith.constant 0 : index
    %c0_140 = arith.constant 0 : index
    %317 = vector.load %arg13[%c0_139, %c0_140] : memref<8x128xbf16, #tpu.memory_space<vmem>>, vector<8x128xbf16>
    tpu.vector_store %arg13[%c0_139, %c0_140], %306 {strides = array<i32>} : memref<8x128xbf16, #tpu.memory_space<vmem>>, vector<8x128xbf16>,
    %c0_141 = arith.constant 0 : index
    %c0_142 = arith.constant 0 : index
    %318 = vector.load %arg14[%c0_141, %c0_142] : memref<8x128xf32, #tpu.memory_space<vmem>>, vector<8x128xf32>
    tpu.vector_store %arg14[%c0_141, %c0_142], %299 {strides = array<i32>} : memref<8x128xf32, #tpu.memory_space<vmem>>, vector<8x128xf32>,
    %c0_143 = arith.constant 0 : index
    %c0_144 = arith.constant 0 : index
    %c0_145 = arith.constant 0 : index
    %319 = vector.load %arg16[%c0_143, %c0_144, %c0_145] : memref<8x8x128xf32, #tpu.memory_space<vmem>>, vector<8x8x128xf32>
    %320 = arith.truncf %319 : vector<8x8x128xf32> to vector<8x8x128xbf16>
    %c0_146 = arith.constant 0 : index
    %c0_147 = arith.constant 0 : index
    %c0_148 = arith.constant 0 : index
    %321 = vector.load %arg11[%c0_146, %c0_147, %c0_148] : memref<8x8x128xbf16, #tpu.memory_space<vmem>>, vector<8x8x128xbf16>
    tpu.vector_store %arg11[%c0_146, %c0_147, %c0_148], %320 {strides = array<i32>} : memref<8x8x128xbf16, #tpu.memory_space<vmem>>, vector<8x8x128xbf16>,
    %322 = vector.shape_cast %319 : vector<8x8x128xf32> to vector<64x128xf32>
    %323 = arith.truncf %322 : vector<64x128xf32> to vector<64x128xbf16>
    %c0_149 = arith.constant 0 : index
    %c0_150 = arith.constant 0 : index
    %324 = vector.load %arg5[%c0_149, %c0_150] : memref<128x128xbf16, #tpu.memory_space<vmem>>, vector<128x128xbf16>
    %cst_151 = arith.constant dense<0.000000e+00> : vector<64x128xf32>
    %325 = tpu.matmul %323, %324, %cst_151 {dimension_numbers = #tpu.dot_dimension_numbers<[1], [0], [0], [1], [0, 0, 1, 1], [], []>} : vector<64x128xbf16>, vector<128x128xbf16>, vector<64x128xf32> -> vector<64x128xf32>
    %c0_152 = arith.constant 0 : index
    %c0_153 = arith.constant 0 : index
    %326 = vector.load %arg7[%c0_152, %c0_153] : memref<1x128xf32, #tpu.memory_space<vmem>>, vector<1x128xf32>
    %327 = vector.broadcast %326 : vector<1x128xf32> to vector<64x128xf32>
    %328 = arith.addf %325, %327 : vector<64x128xf32>
    %329 = vector.shape_cast %328 : vector<64x128xf32> to vector<8x8x128xf32>
    %c0_154 = arith.constant 0 : index
    %c0_155 = arith.constant 0 : index
    %c0_156 = arith.constant 0 : index
    %330 = vector.load %arg10[%c0_154, %c0_155, %c0_156] : memref<8x8x128xf32, #tpu.memory_space<vmem>>, vector<8x8x128xf32>
    tpu.vector_store %arg10[%c0_154, %c0_155, %c0_156], %329 {strides = array<i32>} : memref<8x8x128xf32, #tpu.memory_space<vmem>>, vector<8x8x128xf32>,
    return
  }
  func.func @transform_0(%arg0: i32, %arg1: i32) -> (i32, i32, i32) {
    %c0_i32 = arith.constant 0 : i32
    %c0_i32_0 = arith.constant 0 : i32
    return %arg1, %arg0, %c0_i32 : i32, i32, i32
  }
  func.func @transform_1(%arg0: i32, %arg1: i32) -> (i32, i32) {
    %c0_i32 = arith.constant 0 : i32
    %c0_i32_0 = arith.constant 0 : i32
    %c0_i32_1 = arith.constant 0 : i32
    return %c0_i32, %c0_i32_0 : i32, i32
  }
  func.func @transform_2(%arg0: i32, %arg1: i32) -> (i32, i32) {
    %c0_i32 = arith.constant 0 : i32
    %c0_i32_0 = arith.constant 0 : i32
    %c0_i32_1 = arith.constant 0 : i32
    return %c0_i32, %c0_i32_0 : i32, i32
  }
  func.func @transform_3(%arg0: i32, %arg1: i32) -> (i32, i32) {
    %c0_i32 = arith.constant 0 : i32
    %c0_i32_0 = arith.constant 0 : i32
    %c0_i32_1 = arith.constant 0 : i32
    return %c0_i32, %c0_i32_0 : i32, i32
  }
  func.func @transform_4(%arg0: i32, %arg1: i32) -> (i32, i32) {
    %c0_i32 = arith.constant 0 : i32
    %c0_i32_0 = arith.constant 0 : i32
    %c0_i32_1 = arith.constant 0 : i32
    return %c0_i32, %c0_i32_0 : i32, i32
  }
  func.func @transform_5(%arg0: i32, %arg1: i32) -> (i32, i32) {
    %c0_i32 = arith.constant 0 : i32
    %c0_i32_0 = arith.constant 0 : i32
    %c0_i32_1 = arith.constant 0 : i32
    return %c0_i32, %c0_i32_0 : i32, i32
  }
  func.func @transform_6(%arg0: i32, %arg1: i32) -> (i32, i32) {
    %c0_i32 = arith.constant 0 : i32
    %c0_i32_0 = arith.constant 0 : i32
    %c0_i32_1 = arith.constant 0 : i32
    return %c0_i32, %c0_i32_0 : i32, i32
  }
  func.func @transform_7(%arg0: i32, %arg1: i32) -> (i32, i32) {
    %c0_i32 = arith.constant 0 : i32
    %c0_i32_0 = arith.constant 0 : i32
    %c0_i32_1 = arith.constant 0 : i32
    return %c0_i32, %c0_i32_0 : i32, i32
  }
  func.func @transform_8(%arg0: i32, %arg1: i32) -> (i32, i32, i32) {
    %c0_i32 = arith.constant 0 : i32
    %c0_i32_0 = arith.constant 0 : i32
    return %arg1, %arg0, %c0_i32 : i32, i32, i32
  }
  func.func @transform_9(%arg0: i32, %arg1: i32) -> (i32, i32, i32) {
    %c0_i32 = arith.constant 0 : i32
    %c0_i32_0 = arith.constant 0 : i32
    return %arg1, %arg0, %c0_i32 : i32, i32, i32
  }
}

</mosaic_0001>

<llo_original>
// kernel: tpu_custom_call.1
$region0: #{tpu_custom_call.1}
  #allocation0 [shape = 'u32[]', space=smem, size = 0x4, offset = 0x4, fixed_abs, tag = 'smem constant byte address 0x4 - core index']
  #allocation1 [shape = 'u32[144,128]{1,0:T(1,128)}', space=vmem, size = 0x12000, scoped, tag = 'internal scratch']
  #allocation2 [shape = 'f32[8,128]{1,0:T(8,128)}', space=vmem, size = 0x1000, scoped, tag = 'scratch operand']
  #allocation3 [shape = 'bf16[8,128]{1,0:T(8,128)(2,1)}', space=vmem, size = 0x800, scoped, tag = 'scratch operand']
  #allocation4 [shape = 'f32[8,128]{1,0:T(8,128)}', space=vmem, size = 0x1000, scoped, tag = 'scratch operand']
  #allocation5 [shape = 'bf16[4,8,128]{2,1,0:T(8,128)(2,1)}', space=vmem, size = 0x2000, scoped, tag = 'scratch operand']
  #allocation6 [shape = 'f32[8,8,128]{2,1,0:T(8,128)}', space=vmem, size = 0x8000, scoped, tag = 'scratch operand']
  %s0 = inlined_call_operand.hbm [shape: f32[8,8,128], index: 0, kind: input, shape index: {}]
  %s1 = inlined_call_operand.hbm [shape: bf16[128,128], index: 1, kind: input, shape index: {}]
  %s2 = inlined_call_operand.hbm [shape: bf16[128,128], index: 2, kind: input, shape index: {}]
  %s3 = inlined_call_operand.hbm [shape: bf16[128,128], index: 3, kind: input, shape index: {}]
  %s4 = inlined_call_operand.vmem [shape: f32[1,128], index: 4, kind: input, shape index: {}]
  %s5 = inlined_call_operand.vmem [shape: f32[1,128], index: 5, kind: input, shape index: {}]
  %s6 = inlined_call_operand.vmem [shape: f32[1,128], index: 6, kind: input, shape index: {}]
  %s7 = inlined_call_operand.vmem [shape: f32[1,128], index: 7, kind: input, shape index: {}]
  %s8 = inlined_call_operand.hbm [shape: f32[8,8,128], index: 8, kind: output, shape index: {0}]
  %s9 = inlined_call_operand.hbm [shape: bf16[8,8,128], index: 9, kind: output, shape index: {1}]
  %10 = xla_tuple %s8, %s9
  %s11 = sld [smem:[#allocation0]]
  $region70: #{tpu_custom_call.1} parent=0
    _
  %s13 = ssub.s32 1, %s11
  %s14 = scalar_select 0, %s13, %s11
  $region1: #{tpu_custom_call.1} parent=0
    #allocation7 [shape = 'u8[32768]{0}', space=vmem, size = 0x8000, scoped, tag = 'input window, operand 0, single buffered']
    #allocation8 [shape = 's32[1]{0}', space=sflag, size = 0x4, scoped, tag = 'scoped memory for tpu_custom_call.1']
    #allocation9 [shape = 's32[1]{0}', space=sflag, size = 0x4, scoped, tag = 'scoped memory for tpu_custom_call.1']
    #allocation10 [shape = 'u8[32768]{0}', space=vmem, size = 0x8000, scoped, tag = 'input window, operand 1, single buffered']
    #allocation11 [shape = 's32[1]{0}', space=sflag, size = 0x4, scoped, tag = 'scoped memory for tpu_custom_call.1']
    #allocation12 [shape = 'u8[32768]{0}', space=vmem, size = 0x8000, scoped, tag = 'input window, operand 2, single buffered']
    #allocation13 [shape = 'u8[32768]{0}', space=vmem, size = 0x8000, scoped, tag = 'input window, operand 3, single buffered']
    #allocation14 [shape = 's32[1]{0}', space=sflag, size = 0x4, scoped, tag = 'scoped memory for tpu_custom_call.1']
    #allocation15 [shape = 'u8[32768]{0}', space=vmem, size = 0x8000, scoped, tag = 'output window, operand 0, single buffered']
    #allocation16 [shape = 'u8[16384]{0}', space=vmem, size = 0x4000, scoped, tag = 'output window, operand 1, single buffered']
    #allocation17 [shape = 's32[1]{0}', space=sflag, size = 0x4, scoped, tag = 'scoped memory for tpu_custom_call.1']
    %15 = vsyncpa [#allocation8], 0
    %16 = vsyncpa [#allocation11], 0
    %17 = vsyncpa [#allocation14], 0
    %18 = vsyncpa [#allocation9], 0
    %19 = vsyncpa [#allocation17], 0
    // Predicated region
    $region2: #{tpu_custom_call.1} parent=1 // pred_check
      _
    $region3: #{tpu_custom_call.1} parent=1 // pred_check_branch
      %21 = sbr.rel (0) target = $region5
    $region4: #{tpu_custom_call.1} parent=1 // pred_region
      %s23 = ssub.s32 1024, 1024
      %24 = vsyncadd [#allocation8], %s23
      %s25 = sshll.u32 [#allocation7], 4
      %s26 = int_to_ptr.vmem [resolvable:$true] %s25
      %31 = dma.hbm_to_vmem [thread:$0]  %s0, 1024, %s26, [#allocation8], 128, 128, 8
    $region5: #{tpu_custom_call.1} parent=1 // pred_fallthru
      _
    // Predicated region
    $region6: #{tpu_custom_call.1} parent=1 // pred_check
      _
    $region7: #{tpu_custom_call.1} parent=1 // pred_check_branch
      %33 = sbr.rel (0) target = $region9
    $region8: #{tpu_custom_call.1} parent=1 // pred_region
      %s35 = ssub.s32 1024, 1024
      %36 = vsyncadd [#allocation11], %s35
      %s37 = sshll.u32 [#allocation10], 4
      %s38 = int_to_ptr.vmem [resolvable:$true] %s37
      %43 = dma.hbm_to_vmem [thread:$0]  %s1, 1024, %s38, [#allocation11], 64, 64, 4
    $region9: #{tpu_custom_call.1} parent=1 // pred_fallthru
      _
    // Predicated region
    $region10: #{tpu_custom_call.1} parent=1 // pred_check
      _
    $region11: #{tpu_custom_call.1} parent=1 // pred_check_branch
      %45 = sbr.rel (0) target = $region13
    $region12: #{tpu_custom_call.1} parent=1 // pred_region
      %s47 = ssub.s32 1024, 1024
      %48 = vsyncadd [#allocation11], %s47
      %s49 = sshll.u32 [#allocation12], 4
      %s50 = int_to_ptr.vmem [resolvable:$true] %s49
      %55 = dma.hbm_to_vmem [thread:$0]  %s2, 1024, %s50, [#allocation11], 64, 64, 4
    $region13: #{tpu_custom_call.1} parent=1 // pred_fallthru
      _
    // Predicated region
    $region14: #{tpu_custom_call.1} parent=1 // pred_check
      _
    $region15: #{tpu_custom_call.1} parent=1 // pred_check_branch
      %57 = sbr.rel (0) target = $region17
    $region16: #{tpu_custom_call.1} parent=1 // pred_region
      %s59 = ssub.s32 1024, 1024
      %60 = vsyncadd [#allocation14], %s59
      %s61 = sshll.u32 [#allocation13], 4
      %s62 = int_to_ptr.vmem [resolvable:$true] %s61
      %67 = dma.hbm_to_vmem [thread:$0]  %s3, 1024, %s62, [#allocation14], 64, 64, 4
    $region17: #{tpu_custom_call.1} parent=1 // pred_fallthru
      _
    // Predicated region
    $region18: #{tpu_custom_call.1} parent=1 // pred_check
      _
    $region19: #{tpu_custom_call.1} parent=1 // pred_check_branch
      %69 = sbr.rel (0) target = $region21
    $region20: #{tpu_custom_call.1} parent=1 // pred_region
      _
    $region21: #{tpu_custom_call.1} parent=1 // pred_fallthru
      _
    // Predicated region
    $region22: #{tpu_custom_call.1} parent=1 // pred_check
      _
    $region23: #{tpu_custom_call.1} parent=1 // pred_check_branch
      %71 = sbr.rel (0) target = $region25
    $region24: #{tpu_custom_call.1} parent=1 // pred_region
      _
    $region25: #{tpu_custom_call.1} parent=1 // pred_fallthru
      _
    // Predicated region
    $region26: #{tpu_custom_call.1} parent=1 // pred_check
      _
    $region27: #{tpu_custom_call.1} parent=1 // pred_check_branch
      %73 = sbr.rel (0) target = $region29
    $region28: #{tpu_custom_call.1} parent=1 // pred_region
      _
    $region29: #{tpu_custom_call.1} parent=1 // pred_fallthru
      _
    // Predicated region
    $region30: #{tpu_custom_call.1} parent=1 // pred_check
      _
    $region31: #{tpu_custom_call.1} parent=1 // pred_check_branch
      %75 = sbr.rel (0) target = $region33
    $region32: #{tpu_custom_call.1} parent=1 // pred_region
      _
    $region33: #{tpu_custom_call.1} parent=1 // pred_fallthru
      _
    // Predicated region
    $region34: #{tpu_custom_call.1} parent=1 // pred_check
      _
    $region35: #{tpu_custom_call.1} parent=1 // pred_check_branch
      %77 = sbr.rel (0) target = $region37
    $region36: #{tpu_custom_call.1} parent=1 // pred_region
      %78 = dma.done [#allocation8], 1024
    $region37: #{tpu_custom_call.1} parent=1 // pred_fallthru
      _
    // Predicated region
    $region38: #{tpu_custom_call.1} parent=1 // pred_check
      _
    $region39: #{tpu_custom_call.1} parent=1 // pred_check_branch
      %80 = sbr.rel (0) target = $region41
    $region40: #{tpu_custom_call.1} parent=1 // pred_region
      %81 = dma.done [#allocation11], 1024
    $region41: #{tpu_custom_call.1} parent=1 // pred_fallthru
      _
    // Predicated region
    $region42: #{tpu_custom_call.1} parent=1 // pred_check
      _
    $region43: #{tpu_custom_call.1} parent=1 // pred_check_branch
      %83 = sbr.rel (0) target = $region45
    $region44: #{tpu_custom_call.1} parent=1 // pred_region
      %84 = dma.done [#allocation11], 1024
    $region45: #{tpu_custom_call.1} parent=1 // pred_fallthru
      _
    // Predicated region
    $region46: #{tpu_custom_call.1} parent=1 // pred_check
      _
    $region47: #{tpu_custom_call.1} parent=1 // pred_check_branch
      %86 = sbr.rel (0) target = $region49
    $region48: #{tpu_custom_call.1} parent=1 // pred_region
      %87 = dma.done [#allocation14], 1024
    $region49: #{tpu_custom_call.1} parent=1 // pred_fallthru
      _
    %p89 = scmp.eq.s32.totalorder 0, 0
    // Predicated region
    $region50: #{tpu_custom_call.1} parent=1 // pred_check
      %p90 = pneg %p89
    $region51: #{tpu_custom_call.1} parent=1 // pred_check_branch
      %92 = sbr.rel (%p90) target = $region53
    $region52: #{tpu_custom_call.1} parent=1 // pred_region
      %93 = vst [vmem:[#allocation2] sm:$0xff] 0.0
      %94 = vst [vmem:[#allocation3] sm:$0xf] 0
      %95 = vst [vmem:[#allocation4] sm:$0xff] 0.0
      %96 = vst [vmem:[#allocation5] sm:$0xf] 0
      %97 = vst [vmem:[#allocation5 + $0x4] sm:$0xf] 0
      %98 = vst [vmem:[#allocation5 + $0x8] sm:$0xf] 0
      %99 = vst [vmem:[#allocation5 + $0xc] sm:$0xf] 0
    $region53: #{tpu_custom_call.1} parent=1 // pred_fallthru
      _
    %v100 = vld [vmem:[#allocation10] sm:$0xf]
    %v101 = vld [vmem:[#allocation10 + $0x4] sm:$0xf]
    %v102 = vld [vmem:[#allocation10 + $0x8] sm:$0xf]
    %v103 = vld [vmem:[#allocation10 + $0xc] sm:$0xf]
    %v104 = vld [vmem:[#allocation10 + $0x10] sm:$0xf]
    %v105 = vld [vmem:[#allocation10 + $0x14] sm:$0xf]
    %v106 = vld [vmem:[#allocation10 + $0x18] sm:$0xf]
    %v107 = vld [vmem:[#allocation10 + $0x1c] sm:$0xf]
    %v108 = vld [vmem:[#allocation10 + $0x20] sm:$0xf]
    %v109 = vld [vmem:[#allocation10 + $0x24] sm:$0xf]
    %v110 = vld [vmem:[#allocation10 + $0x28] sm:$0xf]
    %v111 = vld [vmem:[#allocation10 + $0x2c] sm:$0xf]
    %v112 = vld [vmem:[#allocation10 + $0x30] sm:$0xf]
    %v113 = vld [vmem:[#allocation10 + $0x34] sm:$0xf]
    %v114 = vld [vmem:[#allocation10 + $0x38] sm:$0xf]
    %v115 = vld [vmem:[#allocation10 + $0x3c] sm:$0xf]
    %v116 = vld [vmem:[#allocation12] sm:$0xf]
    %v117 = vld [vmem:[#allocation12 + $0x4] sm:$0xf]
    %v118 = vld [vmem:[#allocation12 + $0x8] sm:$0xf]
    %v119 = vld [vmem:[#allocation12 + $0xc] sm:$0xf]
    %v120 = vld [vmem:[#allocation12 + $0x10] sm:$0xf]
    %v121 = vld [vmem:[#allocation12 + $0x14] sm:$0xf]
    %v122 = vld [vmem:[#allocation12 + $0x18] sm:$0xf]
    %v123 = vld [vmem:[#allocation12 + $0x1c] sm:$0xf]
    %v124 = vld [vmem:[#allocation12 + $0x20] sm:$0xf]
    %v125 = vld [vmem:[#allocation12 + $0x24] sm:$0xf]
    %v126 = vld [vmem:[#allocation12 + $0x28] sm:$0xf]
    %v127 = vld [vmem:[#allocation12 + $0x2c] sm:$0xf]
    %v128 = vld [vmem:[#allocation12 + $0x30] sm:$0xf]
    %v129 = vld [vmem:[#allocation12 + $0x34] sm:$0xf]
    %v130 = vld [vmem:[#allocation12 + $0x38] sm:$0xf]
    %v131 = vld [vmem:[#allocation12 + $0x3c] sm:$0xf]
    %v132 = vld [vmem:[%s6] sm:$0x1]
    %v133 = vld [vmem:[%s7] sm:$0x1]
    %v134 = vld [vmem:[%s4] sm:$0x1]
    %s135 = smul.u32 0, 8
    %v136 = vld [vmem:[#allocation2] sm:$0xff]
    %v137 = vld [vmem:[#allocation3] sm:$0xf]
    %v138 = vld [vmem:[#allocation4] sm:$0xff]
    %s139 = sadd.s32 %s135, 4294967293
    %s140 = sand.u32 %s139, 3
    %s141 = smul.addr %s140, 4
    %s142 = scalar_lea.vmem [#allocation5], %s141
    %v143 = vld [vmem:[%s142] sm:$0xf]
    %p144 = scmp.ge.s32.totalorder %s135, 3
    %v146 = vlaneseq
    %v147 = vshrl.u32 %v146, 7
    %v148 = vsub.s32 0, %v147
    %v149 = vrot.slane %v134, %v148
    %v167 = vunpack.c.l.b16 %v116
    %v168 = vunpack.c.l.b16 %v117
    %v169 = vunpack.c.l.b16 %v118
    %v170 = vunpack.c.l.b16 %v119
    %v171 = vunpack.c.l.b16 %v120
    %v172 = vunpack.c.l.b16 %v121
    %v173 = vunpack.c.l.b16 %v122
    %v174 = vunpack.c.l.b16 %v123
    %v175 = vunpack.c.l.b16 %v124
    %v176 = vunpack.c.l.b16 %v125
    %v177 = vunpack.c.l.b16 %v126
    %v178 = vunpack.c.l.b16 %v127
    %v179 = vunpack.c.l.b16 %v128
    %v180 = vunpack.c.l.b16 %v129
    %v181 = vunpack.c.l.b16 %v130
    %v182 = vunpack.c.l.b16 %v131
    %v183 = vpack.c.b16 %v168, %v167
    %v184 = vpack.c.b16 %v170, %v169
    %v185 = vpack.c.b16 %v172, %v171
    %v186 = vpack.c.b16 %v174, %v173
    %v187 = vpack.c.b16 %v176, %v175
    %v188 = vpack.c.b16 %v178, %v177
    %v189 = vpack.c.b16 %v180, %v179
    %v190 = vpack.c.b16 %v182, %v181
    %199 = vmatprep.subr.bf16.mxu0 0
    %200 = vmatpush1.bf16.msra.mxu0 %v183
    %201 = vmatprep.subr.bf16.mxu0 0
    %202 = vmatpush1.bf16.msra.mxu0 %v184
    %203 = vmatprep.subr.bf16.mxu0 0
    %204 = vmatpush1.bf16.msra.mxu0 %v185
    %205 = vmatprep.subr.bf16.mxu0 0
    %206 = vmatpush1.bf16.msra.mxu0 %v186
    %207 = vmatprep.subr.bf16.mxu0 0
    %208 = vmatpush1.bf16.msra.mxu0 %v187
    %209 = vmatprep.subr.bf16.mxu0 0
    %210 = vmatpush1.bf16.msra.mxu0 %v188
    %211 = vmatprep.subr.bf16.mxu0 0
    %212 = vmatpush1.bf16.msra.mxu0 %v189
    %213 = vmatprep.subr.bf16.mxu0 0
    %214 = vmatpush1.bf16.msra.mxu0 %v190
    %215 = vmatprep.subr.bf16.mxu0 0
    %216 = vmatpush1.bf16.msra.mxu0 0
    %217 = vmatprep.subr.bf16.mxu0 0
    %218 = vmatpush1.bf16.msra.mxu0 0
    %219 = vmatprep.subr.bf16.mxu0 0
    %220 = vmatpush1.bf16.msra.mxu0 0
    %221 = vmatprep.subr.bf16.mxu0 0
    %222 = vmatpush1.bf16.msra.mxu0 0
    %223 = vmatprep.subr.bf16.mxu0 0
    %224 = vmatpush1.bf16.msra.mxu0 0
    %225 = vmatprep.subr.bf16.mxu0 0
    %226 = vmatpush1.bf16.msra.mxu0 0
    %227 = vmatprep.subr.bf16.mxu0 0
    %228 = vmatpush1.bf16.msra.mxu0 0
    %229 = vmatprep.subr.bf16.mxu0 0
    %230 = vmatpush1.bf16.msra.mxu0 0
    %231 = vmatprep.mubr.bf16.mxu0 0
    %232 = vmatmul.mubr.bf16.gmra.mrb[0].mxu0 %v143
    %v233 = vpop.f32.mrb[0].mxu0
    %v234 = vadd.f32 %v149, %v233
    %v235 = vpop.f32.mrb[0].mxu0
    %v236 = vpop.f32.mrb[0].mxu0
    %v237 = vpop.f32.mrb[0].mxu0
    %238 = vdwg.mxu0
    %s239 = scalar_select %p144, 1, 0
    %v240 = vstv %s239
    %vm241 = vcmp.eq.s32.totalorder %v240, 1
    %v242 = vsel %vm241, %v234, 0.0
    %v243 = vld [vmem:[#allocation7] sm:$0xff]
    %v260 = vunpack.c.l.b16 %v100
    %v261 = vunpack.c.l.b16 %v101
    %v262 = vunpack.c.l.b16 %v102
    %v263 = vunpack.c.l.b16 %v103
    %v264 = vunpack.c.l.b16 %v104
    %v265 = vunpack.c.l.b16 %v105
    %v266 = vunpack.c.l.b16 %v106
    %v267 = vunpack.c.l.b16 %v107
    %v268 = vunpack.c.l.b16 %v108
    %v269 = vunpack.c.l.b16 %v109
    %v270 = vunpack.c.l.b16 %v110
    %v271 = vunpack.c.l.b16 %v111
    %v272 = vunpack.c.l.b16 %v112
    %v273 = vunpack.c.l.b16 %v113
    %v274 = vunpack.c.l.b16 %v114
    %v275 = vunpack.c.l.b16 %v115
    %v276 = vpack.c.b16 %v261, %v260
    %v277 = vpack.c.b16 %v263, %v262
    %v278 = vpack.c.b16 %v265, %v264
    %v279 = vpack.c.b16 %v267, %v266
    %v280 = vpack.c.b16 %v269, %v268
    %v281 = vpack.c.b16 %v271, %v270
    %v282 = vpack.c.b16 %v273, %v272
    %v283 = vpack.c.b16 %v275, %v274
    %292 = vmatprep.subr.bf16.mxu0 0
    %293 = vmatpush1.bf16.msra.mxu0 %v276
    %294 = vmatprep.subr.bf16.mxu0 0
    %295 = vmatpush1.bf16.msra.mxu0 %v277
    %296 = vmatprep.subr.bf16.mxu0 0
    %297 = vmatpush1.bf16.msra.mxu0 %v278
    %298 = vmatprep.subr.bf16.mxu0 0
    %299 = vmatpush1.bf16.msra.mxu0 %v279
    %300 = vmatprep.subr.bf16.mxu0 0
    %301 = vmatpush1.bf16.msra.mxu0 %v280
    %302 = vmatprep.subr.bf16.mxu0 0
    %303 = vmatpush1.bf16.msra.mxu0 %v281
    %304 = vmatprep.subr.bf16.mxu0 0
    %305 = vmatpush1.bf16.msra.mxu0 %v282
    %306 = vmatprep.subr.bf16.mxu0 0
    %307 = vmatpush1.bf16.msra.mxu0 %v283
    %308 = vmatprep.subr.bf16.mxu0 0
    %309 = vmatpush1.bf16.msra.mxu0 0
    %310 = vmatprep.subr.bf16.mxu0 0
    %311 = vmatpush1.bf16.msra.mxu0 0
    %312 = vmatprep.subr.bf16.mxu0 0
    %313 = vmatpush1.bf16.msra.mxu0 0
    %314 = vmatprep.subr.bf16.mxu0 0
    %315 = vmatpush1.bf16.msra.mxu0 0
    %316 = vmatprep.subr.bf16.mxu0 0
    %317 = vmatpush1.bf16.msra.mxu0 0
    %318 = vmatprep.subr.bf16.mxu0 0
    %319 = vmatpush1.bf16.msra.mxu0 0
    %320 = vmatprep.subr.bf16.mxu0 0
    %321 = vmatpush1.bf16.msra.mxu0 0
    %322 = vmatprep.subr.bf16.mxu0 0
    %323 = vmatpush1.bf16.msra.mxu0 0
    %324 = vmatprep.mubr.bf16.mxu0 0
    %325 = vmatmul.mubr.bf16.gmra.mrb[0].mxu0 %v137
    %v326 = vpop.f32.mrb[0].mxu0
    %v327 = vadd.f32 0.0, %v326
    %v328 = vpop.f32.mrb[0].mxu0
    %v329 = vpop.f32.mrb[0].mxu0
    %v330 = vpop.f32.mrb[0].mxu0
    %331 = vdwg.mxu0
    %v332 = vadd.f32 %v243, %v327
    %v333 = vadd.f32 %v332, %v242
    %v334 = vsub.f32 %v333, %v138
    %v336 = vlaneseq
    %v337 = vshrl.u32 %v336, 7
    %v338 = vsub.s32 0, %v337
    %v339 = vrot.slane %v133, %v338
    %v341 = vmul.f32 %v339, %v334
    %v342 = vadd.f32 %v341, %v138
    %v343 = vtanh.pop %v342
    %v344 = vsub.f32 %v343, %v136
    %v346 = vlaneseq
    %v347 = vshrl.u32 %v346, 7
    %v348 = vsub.s32 0, %v347
    %v349 = vrot.slane %v132, %v348
    %v351 = vmul.f32 %v349, %v344
    %v352 = vadd.f32 %v351, %v136
    %v353 = vtanh.pop %v352
    %v354 = vpack.c.bf16 %v353, %v353
    %s355 = sand.u32 %s135, 3
    %s356 = smul.addr %s355, 4
    %s357 = scalar_lea.vmem [#allocation5], %s356
    %358 = vst [vmem:[%s357] sm:$0xf] %v354
    %359 = vst [vmem:[#allocation6] sm:$0xff] %v353
    %s360 = sadd.s32 %s135, 1
    %s361 = sadd.s32 %s135, 4294967294
    %s362 = sand.u32 %s361, 3
    %s363 = smul.addr %s362, 4
    %s364 = scalar_lea.vmem [#allocation5], %s363
    %v365 = vld [vmem:[%s364] sm:$0xf]
    %p366 = scmp.ge.s32.totalorder %s360, 3
    %367 = vmatprep.subr.bf16.mxu0 0
    %368 = vmatpush1.bf16.msra.mxu0 %v183
    %369 = vmatprep.subr.bf16.mxu0 0
    %370 = vmatpush1.bf16.msra.mxu0 %v184
    %371 = vmatprep.subr.bf16.mxu0 0
    %372 = vmatpush1.bf16.msra.mxu0 %v185
    %373 = vmatprep.subr.bf16.mxu0 0
    %374 = vmatpush1.bf16.msra.mxu0 %v186
    %375 = vmatprep.subr.bf16.mxu0 0
    %376 = vmatpush1.bf16.msra.mxu0 %v187
    %377 = vmatprep.subr.bf16.mxu0 0
    %378 = vmatpush1.bf16.msra.mxu0 %v188
    %379 = vmatprep.subr.bf16.mxu0 0
    %380 = vmatpush1.bf16.msra.mxu0 %v189
    %381 = vmatprep.subr.bf16.mxu0 0
    %382 = vmatpush1.bf16.msra.mxu0 %v190
    %383 = vmatprep.subr.bf16.mxu0 0
    %384 = vmatpush1.bf16.msra.mxu0 0
    %385 = vmatprep.subr.bf16.mxu0 0
    %386 = vmatpush1.bf16.msra.mxu0 0
    %387 = vmatprep.subr.bf16.mxu0 0
    %388 = vmatpush1.bf16.msra.mxu0 0
    %389 = vmatprep.subr.bf16.mxu0 0
    %390 = vmatpush1.bf16.msra.mxu0 0
    %391 = vmatprep.subr.bf16.mxu0 0
    %392 = vmatpush1.bf16.msra.mxu0 0
    %393 = vmatprep.subr.bf16.mxu0 0
    %394 = vmatpush1.bf16.msra.mxu0 0
    %395 = vmatprep.subr.bf16.mxu0 0
    %396 = vmatpush1.bf16.msra.mxu0 0
    %397 = vmatprep.subr.bf16.mxu0 0
    %398 = vmatpush1.bf16.msra.mxu0 0
    %399 = vmatprep.mubr.bf16.mxu0 0
    %400 = vmatmul.mubr.bf16.gmra.mrb[0].mxu0 %v365
    %v401 = vpop.f32.mrb[0].mxu0
    %v402 = vadd.f32 %v149, %v401
    %v403 = vpop.f32.mrb[0].mxu0
    %v404 = vpop.f32.mrb[0].mxu0
    %v405 = vpop.f32.mrb[0].mxu0
    %406 = vdwg.mxu0
    %s407 = scalar_select %p366, 1, 0
    %v408 = vstv %s407
    %vm409 = vcmp.eq.s32.totalorder %v408, 1
    %v410 = vsel %vm409, %v402, 0.0
    %s411 = scalar_lea.vmem [#allocation7], 8
    %v412 = vld [vmem:[%s411] sm:$0xff]
    %413 = vmatprep.subr.bf16.mxu0 0
    %414 = vmatpush1.bf16.msra.mxu0 %v276
    %415 = vmatprep.subr.bf16.mxu0 0
    %416 = vmatpush1.bf16.msra.mxu0 %v277
    %417 = vmatprep.subr.bf16.mxu0 0
    %418 = vmatpush1.bf16.msra.mxu0 %v278
    %419 = vmatprep.subr.bf16.mxu0 0
    %420 = vmatpush1.bf16.msra.mxu0 %v279
    %421 = vmatprep.subr.bf16.mxu0 0
    %422 = vmatpush1.bf16.msra.mxu0 %v280
    %423 = vmatprep.subr.bf16.mxu0 0
    %424 = vmatpush1.bf16.msra.mxu0 %v281
    %425 = vmatprep.subr.bf16.mxu0 0
    %426 = vmatpush1.bf16.msra.mxu0 %v282
    %427 = vmatprep.subr.bf16.mxu0 0
    %428 = vmatpush1.bf16.msra.mxu0 %v283
    %429 = vmatprep.subr.bf16.mxu0 0
    %430 = vmatpush1.bf16.msra.mxu0 0
    %431 = vmatprep.subr.bf16.mxu0 0
    %432 = vmatpush1.bf16.msra.mxu0 0
    %433 = vmatprep.subr.bf16.mxu0 0
    %434 = vmatpush1.bf16.msra.mxu0 0
    %435 = vmatprep.subr.bf16.mxu0 0
    %436 = vmatpush1.bf16.msra.mxu0 0
    %437 = vmatprep.subr.bf16.mxu0 0
    %438 = vmatpush1.bf16.msra.mxu0 0
    %439 = vmatprep.subr.bf16.mxu0 0
    %440 = vmatpush1.bf16.msra.mxu0 0
    %441 = vmatprep.subr.bf16.mxu0 0
    %442 = vmatpush1.bf16.msra.mxu0 0
    %443 = vmatprep.subr.bf16.mxu0 0
    %444 = vmatpush1.bf16.msra.mxu0 0
    %445 = vmatprep.mubr.bf16.mxu0 0
    %446 = vmatmul.mubr.bf16.gmra.mrb[0].mxu0 %v354
    %v447 = vpop.f32.mrb[0].mxu0
    %v448 = vadd.f32 0.0, %v447
    %v449 = vpop.f32.mrb[0].mxu0
    %v450 = vpop.f32.mrb[0].mxu0
    %v451 = vpop.f32.mrb[0].mxu0
    %452 = vdwg.mxu0
    %v453 = vadd.f32 %v412, %v448
    %v454 = vadd.f32 %v453, %v410
    %v455 = vsub.f32 %v454, %v342
    %v456 = vmul.f32 %v339, %v455
    %v457 = vadd.f32 %v456, %v342
    %v458 = vtanh.pop %v457
    %v459 = vsub.f32 %v458, %v352
    %v460 = vmul.f32 %v349, %v459
    %v461 = vadd.f32 %v460, %v352
    %v462 = vtanh.pop %v461
    %v463 = vpack.c.bf16 %v462, %v462
    %s464 = sand.u32 %s360, 3
    %s465 = smul.addr %s464, 4
    %s466 = scalar_lea.vmem [#allocation5], %s465
    %467 = vst [vmem:[%s466] sm:$0xf] %v463
    %s468 = scalar_lea.vmem [#allocation6], 8
    %469 = vst [vmem:[%s468] sm:$0xff] %v462
    %s470 = sadd.s32 %s135, 2
    %s471 = sadd.s32 %s135, 4294967295
    %s472 = sand.u32 %s471, 3
    %s473 = smul.addr %s472, 4
    %s474 = scalar_lea.vmem [#allocation5], %s473
    %v475 = vld [vmem:[%s474] sm:$0xf]
    %p476 = scmp.ge.s32.totalorder %s470, 3
    %477 = vmatprep.subr.bf16.mxu0 0
    %478 = vmatpush1.bf16.msra.mxu0 %v183
    %479 = vmatprep.subr.bf16.mxu0 0
    %480 = vmatpush1.bf16.msra.mxu0 %v184
    %481 = vmatprep.subr.bf16.mxu0 0
    %482 = vmatpush1.bf16.msra.mxu0 %v185
    %483 = vmatprep.subr.bf16.mxu0 0
    %484 = vmatpush1.bf16.msra.mxu0 %v186
    %485 = vmatprep.subr.bf16.mxu0 0
    %486 = vmatpush1.bf16.msra.mxu0 %v187
    %487 = vmatprep.subr.bf16.mxu0 0
    %488 = vmatpush1.bf16.msra.mxu0 %v188
    %489 = vmatprep.subr.bf16.mxu0 0
    %490 = vmatpush1.bf16.msra.mxu0 %v189
    %491 = vmatprep.subr.bf16.mxu0 0
    %492 = vmatpush1.bf16.msra.mxu0 %v190
    %493 = vmatprep.subr.bf16.mxu0 0
    %494 = vmatpush1.bf16.msra.mxu0 0
    %495 = vmatprep.subr.bf16.mxu0 0
    %496 = vmatpush1.bf16.msra.mxu0 0
    %497 = vmatprep.subr.bf16.mxu0 0
    %498 = vmatpush1.bf16.msra.mxu0 0
    %499 = vmatprep.subr.bf16.mxu0 0
    %500 = vmatpush1.bf16.msra.mxu0 0
    %501 = vmatprep.subr.bf16.mxu0 0
    %502 = vmatpush1.bf16.msra.mxu0 0
    %503 = vmatprep.subr.bf16.mxu0 0
    %504 = vmatpush1.bf16.msra.mxu0 0
    %505 = vmatprep.subr.bf16.mxu0 0
    %506 = vmatpush1.bf16.msra.mxu0 0
    %507 = vmatprep.subr.bf16.mxu0 0
    %508 = vmatpush1.bf16.msra.mxu0 0
    %509 = vmatprep.mubr.bf16.mxu0 0
    %510 = vmatmul.mubr.bf16.gmra.mrb[0].mxu0 %v475
    %v511 = vpop.f32.mrb[0].mxu0
    %v512 = vadd.f32 %v149, %v511
    %v513 = vpop.f32.mrb[0].mxu0
    %v514 = vpop.f32.mrb[0].mxu0
    %v515 = vpop.f32.mrb[0].mxu0
    %516 = vdwg.mxu0
    %s517 = scalar_select %p476, 1, 0
    %v518 = vstv %s517
    %vm519 = vcmp.eq.s32.totalorder %v518, 1
    %v520 = vsel %vm519, %v512, 0.0
    %s521 = scalar_lea.vmem [#allocation7], 16
    %v522 = vld [vmem:[%s521] sm:$0xff]
    %523 = vmatprep.subr.bf16.mxu0 0
    %524 = vmatpush1.bf16.msra.mxu0 %v276
    %525 = vmatprep.subr.bf16.mxu0 0
    %526 = vmatpush1.bf16.msra.mxu0 %v277
    %527 = vmatprep.subr.bf16.mxu0 0
    %528 = vmatpush1.bf16.msra.mxu0 %v278
    %529 = vmatprep.subr.bf16.mxu0 0
    %530 = vmatpush1.bf16.msra.mxu0 %v279
    %531 = vmatprep.subr.bf16.mxu0 0
    %532 = vmatpush1.bf16.msra.mxu0 %v280
    %533 = vmatprep.subr.bf16.mxu0 0
    %534 = vmatpush1.bf16.msra.mxu0 %v281
    %535 = vmatprep.subr.bf16.mxu0 0
    %536 = vmatpush1.bf16.msra.mxu0 %v282
    %537 = vmatprep.subr.bf16.mxu0 0
    %538 = vmatpush1.bf16.msra.mxu0 %v283
    %539 = vmatprep.subr.bf16.mxu0 0
    %540 = vmatpush1.bf16.msra.mxu0 0
    %541 = vmatprep.subr.bf16.mxu0 0
    %542 = vmatpush1.bf16.msra.mxu0 0
    %543 = vmatprep.subr.bf16.mxu0 0
    %544 = vmatpush1.bf16.msra.mxu0 0
    %545 = vmatprep.subr.bf16.mxu0 0
    %546 = vmatpush1.bf16.msra.mxu0 0
    %547 = vmatprep.subr.bf16.mxu0 0
    %548 = vmatpush1.bf16.msra.mxu0 0
    %549 = vmatprep.subr.bf16.mxu0 0
    %550 = vmatpush1.bf16.msra.mxu0 0
    %551 = vmatprep.subr.bf16.mxu0 0
    %552 = vmatpush1.bf16.msra.mxu0 0
    %553 = vmatprep.subr.bf16.mxu0 0
    %554 = vmatpush1.bf16.msra.mxu0 0
    %555 = vmatprep.mubr.bf16.mxu0 0
    %556 = vmatmul.mubr.bf16.gmra.mrb[0].mxu0 %v463
    %v557 = vpop.f32.mrb[0].mxu0
    %v558 = vadd.f32 0.0, %v557
    %v559 = vpop.f32.mrb[0].mxu0
    %v560 = vpop.f32.mrb[0].mxu0
    %v561 = vpop.f32.mrb[0].mxu0
    %562 = vdwg.mxu0
    %v563 = vadd.f32 %v522, %v558
    %v564 = vadd.f32 %v563, %v520
    %v565 = vsub.f32 %v564, %v457
    %v566 = vmul.f32 %v339, %v565
    %v567 = vadd.f32 %v566, %v457
    %v568 = vtanh.pop %v567
    %v569 = vsub.f32 %v568, %v461
    %v570 = vmul.f32 %v349, %v569
    %v571 = vadd.f32 %v570, %v461
    %v572 = vtanh.pop %v571
    %v573 = vpack.c.bf16 %v572, %v572
    %s574 = sand.u32 %s470, 3
    %s575 = smul.addr %s574, 4
    %s576 = scalar_lea.vmem [#allocation5], %s575
    %577 = vst [vmem:[%s576] sm:$0xf] %v573
    %s578 = scalar_lea.vmem [#allocation6], 16
    %579 = vst [vmem:[%s578] sm:$0xff] %v572
    %s580 = sadd.s32 %s135, 3
    %v581 = vld [vmem:[%s357] sm:$0xf]
    %p582 = scmp.ge.s32.totalorder %s580, 3
    %583 = vmatprep.subr.bf16.mxu0 0
    %584 = vmatpush1.bf16.msra.mxu0 %v183
    %585 = vmatprep.subr.bf16.mxu0 0
    %586 = vmatpush1.bf16.msra.mxu0 %v184
    %587 = vmatprep.subr.bf16.mxu0 0
    %588 = vmatpush1.bf16.msra.mxu0 %v185
    %589 = vmatprep.subr.bf16.mxu0 0
    %590 = vmatpush1.bf16.msra.mxu0 %v186
    %591 = vmatprep.subr.bf16.mxu0 0
    %592 = vmatpush1.bf16.msra.mxu0 %v187
    %593 = vmatprep.subr.bf16.mxu0 0
    %594 = vmatpush1.bf16.msra.mxu0 %v188
    %595 = vmatprep.subr.bf16.mxu0 0
    %596 = vmatpush1.bf16.msra.mxu0 %v189
    %597 = vmatprep.subr.bf16.mxu0 0
    %598 = vmatpush1.bf16.msra.mxu0 %v190
    %599 = vmatprep.subr.bf16.mxu0 0
    %600 = vmatpush1.bf16.msra.mxu0 0
    %601 = vmatprep.subr.bf16.mxu0 0
    %602 = vmatpush1.bf16.msra.mxu0 0
    %603 = vmatprep.subr.bf16.mxu0 0
    %604 = vmatpush1.bf16.msra.mxu0 0
    %605 = vmatprep.subr.bf16.mxu0 0
    %606 = vmatpush1.bf16.msra.mxu0 0
    %607 = vmatprep.subr.bf16.mxu0 0
    %608 = vmatpush1.bf16.msra.mxu0 0
    %609 = vmatprep.subr.bf16.mxu0 0
    %610 = vmatpush1.bf16.msra.mxu0 0
    %611 = vmatprep.subr.bf16.mxu0 0
    %612 = vmatpush1.bf16.msra.mxu0 0
    %613 = vmatprep.subr.bf16.mxu0 0
    %614 = vmatpush1.bf16.msra.mxu0 0
    %615 = vmatprep.mubr.bf16.mxu0 0
    %616 = vmatmul.mubr.bf16.gmra.mrb[0].mxu0 %v581
    %v617 = vpop.f32.mrb[0].mxu0
    %v618 = vadd.f32 %v149, %v617
    %v619 = vpop.f32.mrb[0].mxu0
    %v620 = vpop.f32.mrb[0].mxu0
    %v621 = vpop.f32.mrb[0].mxu0
    %622 = vdwg.mxu0
    %s623 = scalar_select %p582, 1, 0
    %v624 = vstv %s623
    %vm625 = vcmp.eq.s32.totalorder %v624, 1
    %v626 = vsel %vm625, %v618, 0.0
    %s627 = scalar_lea.vmem [#allocation7], 24
    %v628 = vld [vmem:[%s627] sm:$0xff]
    %629 = vmatprep.subr.bf16.mxu0 0
    %630 = vmatpush1.bf16.msra.mxu0 %v276
    %631 = vmatprep.subr.bf16.mxu0 0
    %632 = vmatpush1.bf16.msra.mxu0 %v277
    %633 = vmatprep.subr.bf16.mxu0 0
    %634 = vmatpush1.bf16.msra.mxu0 %v278
    %635 = vmatprep.subr.bf16.mxu0 0
    %636 = vmatpush1.bf16.msra.mxu0 %v279
    %637 = vmatprep.subr.bf16.mxu0 0
    %638 = vmatpush1.bf16.msra.mxu0 %v280
    %639 = vmatprep.subr.bf16.mxu0 0
    %640 = vmatpush1.bf16.msra.mxu0 %v281
    %641 = vmatprep.subr.bf16.mxu0 0
    %642 = vmatpush1.bf16.msra.mxu0 %v282
    %643 = vmatprep.subr.bf16.mxu0 0
    %644 = vmatpush1.bf16.msra.mxu0 %v283
    %645 = vmatprep.subr.bf16.mxu0 0
    %646 = vmatpush1.bf16.msra.mxu0 0
    %647 = vmatprep.subr.bf16.mxu0 0
    %648 = vmatpush1.bf16.msra.mxu0 0
    %649 = vmatprep.subr.bf16.mxu0 0
    %650 = vmatpush1.bf16.msra.mxu0 0
    %651 = vmatprep.subr.bf16.mxu0 0
    %652 = vmatpush1.bf16.msra.mxu0 0
    %653 = vmatprep.subr.bf16.mxu0 0
    %654 = vmatpush1.bf16.msra.mxu0 0
    %655 = vmatprep.subr.bf16.mxu0 0
    %656 = vmatpush1.bf16.msra.mxu0 0
    %657 = vmatprep.subr.bf16.mxu0 0
    %658 = vmatpush1.bf16.msra.mxu0 0
    %659 = vmatprep.subr.bf16.mxu0 0
    %660 = vmatpush1.bf16.msra.mxu0 0
    %661 = vmatprep.mubr.bf16.mxu0 0
    %662 = vmatmul.mubr.bf16.gmra.mrb[0].mxu0 %v573
    %v663 = vpop.f32.mrb[0].mxu0
    %v664 = vadd.f32 0.0, %v663
    %v665 = vpop.f32.mrb[0].mxu0
    %v666 = vpop.f32.mrb[0].mxu0
    %v667 = vpop.f32.mrb[0].mxu0
    %668 = vdwg.mxu0
    %v669 = vadd.f32 %v628, %v664
    %v670 = vadd.f32 %v669, %v626
    %v671 = vsub.f32 %v670, %v567
    %v672 = vmul.f32 %v339, %v671
    %v673 = vadd.f32 %v672, %v567
    %v674 = vtanh.pop %v673
    %v675 = vsub.f32 %v674, %v571
    %v676 = vmul.f32 %v349, %v675
    %v677 = vadd.f32 %v676, %v571
    %v678 = vtanh.pop %v677
    %v679 = vpack.c.bf16 %v678, %v678
    %s680 = sand.u32 %s580, 3
    %s681 = smul.addr %s680, 4
    %s682 = scalar_lea.vmem [#allocation5], %s681
    %683 = vst [vmem:[%s682] sm:$0xf] %v679
    %s684 = scalar_lea.vmem [#allocation6], 24
    %685 = vst [vmem:[%s684] sm:$0xff] %v678
    %s686 = sadd.s32 %s135, 4
    %v687 = vld [vmem:[%s466] sm:$0xf]
    %p688 = scmp.ge.s32.totalorder %s686, 3
    %689 = vmatprep.subr.bf16.mxu0 0
    %690 = vmatpush1.bf16.msra.mxu0 %v183
    %691 = vmatprep.subr.bf16.mxu0 0
    %692 = vmatpush1.bf16.msra.mxu0 %v184
    %693 = vmatprep.subr.bf16.mxu0 0
    %694 = vmatpush1.bf16.msra.mxu0 %v185
    %695 = vmatprep.subr.bf16.mxu0 0
    %696 = vmatpush1.bf16.msra.mxu0 %v186
    %697 = vmatprep.subr.bf16.mxu0 0
    %698 = vmatpush1.bf16.msra.mxu0 %v187
    %699 = vmatprep.subr.bf16.mxu0 0
    %700 = vmatpush1.bf16.msra.mxu0 %v188
    %701 = vmatprep.subr.bf16.mxu0 0
    %702 = vmatpush1.bf16.msra.mxu0 %v189
    %703 = vmatprep.subr.bf16.mxu0 0
    %704 = vmatpush1.bf16.msra.mxu0 %v190
    %705 = vmatprep.subr.bf16.mxu0 0
    %706 = vmatpush1.bf16.msra.mxu0 0
    %707 = vmatprep.subr.bf16.mxu0 0
    %708 = vmatpush1.bf16.msra.mxu0 0
    %709 = vmatprep.subr.bf16.mxu0 0
    %710 = vmatpush1.bf16.msra.mxu0 0
    %711 = vmatprep.subr.bf16.mxu0 0
    %712 = vmatpush1.bf16.msra.mxu0 0
    %713 = vmatprep.subr.bf16.mxu0 0
    %714 = vmatpush1.bf16.msra.mxu0 0
    %715 = vmatprep.subr.bf16.mxu0 0
    %716 = vmatpush1.bf16.msra.mxu0 0
    %717 = vmatprep.subr.bf16.mxu0 0
    %718 = vmatpush1.bf16.msra.mxu0 0
    %719 = vmatprep.subr.bf16.mxu0 0
    %720 = vmatpush1.bf16.msra.mxu0 0
    %721 = vmatprep.mubr.bf16.mxu0 0
    %722 = vmatmul.mubr.bf16.gmra.mrb[0].mxu0 %v687
    %v723 = vpop.f32.mrb[0].mxu0
    %v724 = vadd.f32 %v149, %v723
    %v725 = vpop.f32.mrb[0].mxu0
    %v726 = vpop.f32.mrb[0].mxu0
    %v727 = vpop.f32.mrb[0].mxu0
    %728 = vdwg.mxu0
    %s729 = scalar_select %p688, 1, 0
    %v730 = vstv %s729
    %vm731 = vcmp.eq.s32.totalorder %v730, 1
    %v732 = vsel %vm731, %v724, 0.0
    %s733 = scalar_lea.vmem [#allocation7], 32
    %v734 = vld [vmem:[%s733] sm:$0xff]
    %735 = vmatprep.subr.bf16.mxu0 0
    %736 = vmatpush1.bf16.msra.mxu0 %v276
    %737 = vmatprep.subr.bf16.mxu0 0
    %738 = vmatpush1.bf16.msra.mxu0 %v277
    %739 = vmatprep.subr.bf16.mxu0 0
    %740 = vmatpush1.bf16.msra.mxu0 %v278
    %741 = vmatprep.subr.bf16.mxu0 0
    %742 = vmatpush1.bf16.msra.mxu0 %v279
    %743 = vmatprep.subr.bf16.mxu0 0
    %744 = vmatpush1.bf16.msra.mxu0 %v280
    %745 = vmatprep.subr.bf16.mxu0 0
    %746 = vmatpush1.bf16.msra.mxu0 %v281
    %747 = vmatprep.subr.bf16.mxu0 0
    %748 = vmatpush1.bf16.msra.mxu0 %v282
    %749 = vmatprep.subr.bf16.mxu0 0
    %750 = vmatpush1.bf16.msra.mxu0 %v283
    %751 = vmatprep.subr.bf16.mxu0 0
    %752 = vmatpush1.bf16.msra.mxu0 0
    %753 = vmatprep.subr.bf16.mxu0 0
    %754 = vmatpush1.bf16.msra.mxu0 0
    %755 = vmatprep.subr.bf16.mxu0 0
    %756 = vmatpush1.bf16.msra.mxu0 0
    %757 = vmatprep.subr.bf16.mxu0 0
    %758 = vmatpush1.bf16.msra.mxu0 0
    %759 = vmatprep.subr.bf16.mxu0 0
    %760 = vmatpush1.bf16.msra.mxu0 0
    %761 = vmatprep.subr.bf16.mxu0 0
    %762 = vmatpush1.bf16.msra.mxu0 0
    %763 = vmatprep.subr.bf16.mxu0 0
    %764 = vmatpush1.bf16.msra.mxu0 0
    %765 = vmatprep.subr.bf16.mxu0 0
    %766 = vmatpush1.bf16.msra.mxu0 0
    %767 = vmatprep.mubr.bf16.mxu0 0
    %768 = vmatmul.mubr.bf16.gmra.mrb[0].mxu0 %v679
    %v769 = vpop.f32.mrb[0].mxu0
    %v770 = vadd.f32 0.0, %v769
    %v771 = vpop.f32.mrb[0].mxu0
    %v772 = vpop.f32.mrb[0].mxu0
    %v773 = vpop.f32.mrb[0].mxu0
    %774 = vdwg.mxu0
    %v775 = vadd.f32 %v734, %v770
    %v776 = vadd.f32 %v775, %v732
    %v777 = vsub.f32 %v776, %v673
    %v778 = vmul.f32 %v339, %v777
    %v779 = vadd.f32 %v778, %v673
    %v780 = vtanh.pop %v779
    %v781 = vsub.f32 %v780, %v677
    %v782 = vmul.f32 %v349, %v781
    %v783 = vadd.f32 %v782, %v677
    %v784 = vtanh.pop %v783
    %v785 = vpack.c.bf16 %v784, %v784
    %s786 = sand.u32 %s686, 3
    %s787 = smul.addr %s786, 4
    %s788 = scalar_lea.vmem [#allocation5], %s787
    %789 = vst [vmem:[%s788] sm:$0xf] %v785
    %s790 = scalar_lea.vmem [#allocation6], 32
    %791 = vst [vmem:[%s790] sm:$0xff] %v784
    %s792 = sadd.s32 %s135, 5
    %v793 = vld [vmem:[%s576] sm:$0xf]
    %p794 = scmp.ge.s32.totalorder %s792, 3
    %795 = vmatprep.subr.bf16.mxu0 0
    %796 = vmatpush1.bf16.msra.mxu0 %v183
    %797 = vmatprep.subr.bf16.mxu0 0
    %798 = vmatpush1.bf16.msra.mxu0 %v184
    %799 = vmatprep.subr.bf16.mxu0 0
    %800 = vmatpush1.bf16.msra.mxu0 %v185
    %801 = vmatprep.subr.bf16.mxu0 0
    %802 = vmatpush1.bf16.msra.mxu0 %v186
    %803 = vmatprep.subr.bf16.mxu0 0
    %804 = vmatpush1.bf16.msra.mxu0 %v187
    %805 = vmatprep.subr.bf16.mxu0 0
    %806 = vmatpush1.bf16.msra.mxu0 %v188
    %807 = vmatprep.subr.bf16.mxu0 0
    %808 = vmatpush1.bf16.msra.mxu0 %v189
    %809 = vmatprep.subr.bf16.mxu0 0
    %810 = vmatpush1.bf16.msra.mxu0 %v190
    %811 = vmatprep.subr.bf16.mxu0 0
    %812 = vmatpush1.bf16.msra.mxu0 0
    %813 = vmatprep.subr.bf16.mxu0 0
    %814 = vmatpush1.bf16.msra.mxu0 0
    %815 = vmatprep.subr.bf16.mxu0 0
    %816 = vmatpush1.bf16.msra.mxu0 0
    %817 = vmatprep.subr.bf16.mxu0 0
    %818 = vmatpush1.bf16.msra.mxu0 0
    %819 = vmatprep.subr.bf16.mxu0 0
    %820 = vmatpush1.bf16.msra.mxu0 0
    %821 = vmatprep.subr.bf16.mxu0 0
    %822 = vmatpush1.bf16.msra.mxu0 0
    %823 = vmatprep.subr.bf16.mxu0 0
    %824 = vmatpush1.bf16.msra.mxu0 0
    %825 = vmatprep.subr.bf16.mxu0 0
    %826 = vmatpush1.bf16.msra.mxu0 0
    %827 = vmatprep.mubr.bf16.mxu0 0
    %828 = vmatmul.mubr.bf16.gmra.mrb[0].mxu0 %v793
    %v829 = vpop.f32.mrb[0].mxu0
    %v830 = vadd.f32 %v149, %v829
    %v831 = vpop.f32.mrb[0].mxu0
    %v832 = vpop.f32.mrb[0].mxu0
    %v833 = vpop.f32.mrb[0].mxu0
    %834 = vdwg.mxu0
    %s835 = scalar_select %p794, 1, 0
    %v836 = vstv %s835
    %vm837 = vcmp.eq.s32.totalorder %v836, 1
    %v838 = vsel %vm837, %v830, 0.0
    %s839 = scalar_lea.vmem [#allocation7], 40
    %v840 = vld [vmem:[%s839] sm:$0xff]
    %841 = vmatprep.subr.bf16.mxu0 0
    %842 = vmatpush1.bf16.msra.mxu0 %v276
    %843 = vmatprep.subr.bf16.mxu0 0
    %844 = vmatpush1.bf16.msra.mxu0 %v277
    %845 = vmatprep.subr.bf16.mxu0 0
    %846 = vmatpush1.bf16.msra.mxu0 %v278
    %847 = vmatprep.subr.bf16.mxu0 0
    %848 = vmatpush1.bf16.msra.mxu0 %v279
    %849 = vmatprep.subr.bf16.mxu0 0
    %850 = vmatpush1.bf16.msra.mxu0 %v280
    %851 = vmatprep.subr.bf16.mxu0 0
    %852 = vmatpush1.bf16.msra.mxu0 %v281
    %853 = vmatprep.subr.bf16.mxu0 0
    %854 = vmatpush1.bf16.msra.mxu0 %v282
    %855 = vmatprep.subr.bf16.mxu0 0
    %856 = vmatpush1.bf16.msra.mxu0 %v283
    %857 = vmatprep.subr.bf16.mxu0 0
    %858 = vmatpush1.bf16.msra.mxu0 0
    %859 = vmatprep.subr.bf16.mxu0 0
    %860 = vmatpush1.bf16.msra.mxu0 0
    %861 = vmatprep.subr.bf16.mxu0 0
    %862 = vmatpush1.bf16.msra.mxu0 0
    %863 = vmatprep.subr.bf16.mxu0 0
    %864 = vmatpush1.bf16.msra.mxu0 0
    %865 = vmatprep.subr.bf16.mxu0 0
    %866 = vmatpush1.bf16.msra.mxu0 0
    %867 = vmatprep.subr.bf16.mxu0 0
    %868 = vmatpush1.bf16.msra.mxu0 0
    %869 = vmatprep.subr.bf16.mxu0 0
    %870 = vmatpush1.bf16.msra.mxu0 0
    %871 = vmatprep.subr.bf16.mxu0 0
    %872 = vmatpush1.bf16.msra.mxu0 0
    %873 = vmatprep.mubr.bf16.mxu0 0
    %874 = vmatmul.mubr.bf16.gmra.mrb[0].mxu0 %v785
    %v875 = vpop.f32.mrb[0].mxu0
    %v876 = vadd.f32 0.0, %v875
    %v877 = vpop.f32.mrb[0].mxu0
    %v878 = vpop.f32.mrb[0].mxu0
    %v879 = vpop.f32.mrb[0].mxu0
    %880 = vdwg.mxu0
    %v881 = vadd.f32 %v840, %v876
    %v882 = vadd.f32 %v881, %v838
    %v883 = vsub.f32 %v882, %v779
    %v884 = vmul.f32 %v339, %v883
    %v885 = vadd.f32 %v884, %v779
    %v886 = vtanh.pop %v885
    %v887 = vsub.f32 %v886, %v783
    %v888 = vmul.f32 %v349, %v887
    %v889 = vadd.f32 %v888, %v783
    %v890 = vtanh.pop %v889
    %v891 = vpack.c.bf16 %v890, %v890
    %s892 = sand.u32 %s792, 3
    %s893 = smul.addr %s892, 4
    %s894 = scalar_lea.vmem [#allocation5], %s893
    %895 = vst [vmem:[%s894] sm:$0xf] %v891
    %s896 = scalar_lea.vmem [#allocation6], 40
    %897 = vst [vmem:[%s896] sm:$0xff] %v890
    %s898 = sadd.s32 %s135, 6
    %v899 = vld [vmem:[%s682] sm:$0xf]
    %p900 = scmp.ge.s32.totalorder %s898, 3
    %901 = vmatprep.subr.bf16.mxu0 0
    %902 = vmatpush1.bf16.msra.mxu0 %v183
    %903 = vmatprep.subr.bf16.mxu0 0
    %904 = vmatpush1.bf16.msra.mxu0 %v184
    %905 = vmatprep.subr.bf16.mxu0 0
    %906 = vmatpush1.bf16.msra.mxu0 %v185
    %907 = vmatprep.subr.bf16.mxu0 0
    %908 = vmatpush1.bf16.msra.mxu0 %v186
    %909 = vmatprep.subr.bf16.mxu0 0
    %910 = vmatpush1.bf16.msra.mxu0 %v187
    %911 = vmatprep.subr.bf16.mxu0 0
    %912 = vmatpush1.bf16.msra.mxu0 %v188
    %913 = vmatprep.subr.bf16.mxu0 0
    %914 = vmatpush1.bf16.msra.mxu0 %v189
    %915 = vmatprep.subr.bf16.mxu0 0
    %916 = vmatpush1.bf16.msra.mxu0 %v190
    %917 = vmatprep.subr.bf16.mxu0 0
    %918 = vmatpush1.bf16.msra.mxu0 0
    %919 = vmatprep.subr.bf16.mxu0 0
    %920 = vmatpush1.bf16.msra.mxu0 0
    %921 = vmatprep.subr.bf16.mxu0 0
    %922 = vmatpush1.bf16.msra.mxu0 0
    %923 = vmatprep.subr.bf16.mxu0 0
    %924 = vmatpush1.bf16.msra.mxu0 0
    %925 = vmatprep.subr.bf16.mxu0 0
    %926 = vmatpush1.bf16.msra.mxu0 0
    %927 = vmatprep.subr.bf16.mxu0 0
    %928 = vmatpush1.bf16.msra.mxu0 0
    %929 = vmatprep.subr.bf16.mxu0 0
    %930 = vmatpush1.bf16.msra.mxu0 0
    %931 = vmatprep.subr.bf16.mxu0 0
    %932 = vmatpush1.bf16.msra.mxu0 0
    %933 = vmatprep.mubr.bf16.mxu0 0
    %934 = vmatmul.mubr.bf16.gmra.mrb[0].mxu0 %v899
    %v935 = vpop.f32.mrb[0].mxu0
    %v936 = vadd.f32 %v149, %v935
    %v937 = vpop.f32.mrb[0].mxu0
    %v938 = vpop.f32.mrb[0].mxu0
    %v939 = vpop.f32.mrb[0].mxu0
    %940 = vdwg.mxu0
    %s941 = scalar_select %p900, 1, 0
    %v942 = vstv %s941
    %vm943 = vcmp.eq.s32.totalorder %v942, 1
    %v944 = vsel %vm943, %v936, 0.0
    %s945 = scalar_lea.vmem [#allocation7], 48
    %v946 = vld [vmem:[%s945] sm:$0xff]
    %947 = vmatprep.subr.bf16.mxu0 0
    %948 = vmatpush1.bf16.msra.mxu0 %v276
    %949 = vmatprep.subr.bf16.mxu0 0
    %950 = vmatpush1.bf16.msra.mxu0 %v277
    %951 = vmatprep.subr.bf16.mxu0 0
    %952 = vmatpush1.bf16.msra.mxu0 %v278
    %953 = vmatprep.subr.bf16.mxu0 0
    %954 = vmatpush1.bf16.msra.mxu0 %v279
    %955 = vmatprep.subr.bf16.mxu0 0
    %956 = vmatpush1.bf16.msra.mxu0 %v280
    %957 = vmatprep.subr.bf16.mxu0 0
    %958 = vmatpush1.bf16.msra.mxu0 %v281
    %959 = vmatprep.subr.bf16.mxu0 0
    %960 = vmatpush1.bf16.msra.mxu0 %v282
    %961 = vmatprep.subr.bf16.mxu0 0
    %962 = vmatpush1.bf16.msra.mxu0 %v283
    %963 = vmatprep.subr.bf16.mxu0 0
    %964 = vmatpush1.bf16.msra.mxu0 0
    %965 = vmatprep.subr.bf16.mxu0 0
    %966 = vmatpush1.bf16.msra.mxu0 0
    %967 = vmatprep.subr.bf16.mxu0 0
    %968 = vmatpush1.bf16.msra.mxu0 0
    %969 = vmatprep.subr.bf16.mxu0 0
    %970 = vmatpush1.bf16.msra.mxu0 0
    %971 = vmatprep.subr.bf16.mxu0 0
    %972 = vmatpush1.bf16.msra.mxu0 0
    %973 = vmatprep.subr.bf16.mxu0 0
    %974 = vmatpush1.bf16.msra.mxu0 0
    %975 = vmatprep.subr.bf16.mxu0 0
    %976 = vmatpush1.bf16.msra.mxu0 0
    %977 = vmatprep.subr.bf16.mxu0 0
    %978 = vmatpush1.bf16.msra.mxu0 0
    %979 = vmatprep.mubr.bf16.mxu0 0
    %980 = vmatmul.mubr.bf16.gmra.mrb[0].mxu0 %v891
    %v981 = vpop.f32.mrb[0].mxu0
    %v982 = vadd.f32 0.0, %v981
    %v983 = vpop.f32.mrb[0].mxu0
    %v984 = vpop.f32.mrb[0].mxu0
    %v985 = vpop.f32.mrb[0].mxu0
    %986 = vdwg.mxu0
    %v987 = vadd.f32 %v946, %v982
    %v988 = vadd.f32 %v987, %v944
    %v989 = vsub.f32 %v988, %v885
    %v990 = vmul.f32 %v339, %v989
    %v991 = vadd.f32 %v990, %v885
    %v992 = vtanh.pop %v991
    %v993 = vsub.f32 %v992, %v889
    %v994 = vmul.f32 %v349, %v993
    %v995 = vadd.f32 %v994, %v889
    %v996 = vtanh.pop %v995
    %v997 = vpack.c.bf16 %v996, %v996
    %s998 = sand.u32 %s898, 3
    %s999 = smul.addr %s998, 4
    %s1000 = scalar_lea.vmem [#allocation5], %s999
    %1001 = vst [vmem:[%s1000] sm:$0xf] %v997
    %s1002 = scalar_lea.vmem [#allocation6], 48
    %1003 = vst [vmem:[%s1002] sm:$0xff] %v996
    %s1004 = sadd.s32 %s135, 7
    %v1005 = vld [vmem:[%s788] sm:$0xf]
    %p1006 = scmp.ge.s32.totalorder %s1004, 3
    %1007 = vmatprep.subr.bf16.mxu0 0
    %1008 = vmatpush1.bf16.msra.mxu0 %v183
    %1009 = vmatprep.subr.bf16.mxu0 0
    %1010 = vmatpush1.bf16.msra.mxu0 %v184
    %1011 = vmatprep.subr.bf16.mxu0 0
    %1012 = vmatpush1.bf16.msra.mxu0 %v185
    %1013 = vmatprep.subr.bf16.mxu0 0
    %1014 = vmatpush1.bf16.msra.mxu0 %v186
    %1015 = vmatprep.subr.bf16.mxu0 0
    %1016 = vmatpush1.bf16.msra.mxu0 %v187
    %1017 = vmatprep.subr.bf16.mxu0 0
    %1018 = vmatpush1.bf16.msra.mxu0 %v188
    %1019 = vmatprep.subr.bf16.mxu0 0
    %1020 = vmatpush1.bf16.msra.mxu0 %v189
    %1021 = vmatprep.subr.bf16.mxu0 0
    %1022 = vmatpush1.bf16.msra.mxu0 %v190
    %1023 = vmatprep.subr.bf16.mxu0 0
    %1024 = vmatpush1.bf16.msra.mxu0 0
    %1025 = vmatprep.subr.bf16.mxu0 0
    %1026 = vmatpush1.bf16.msra.mxu0 0
    %1027 = vmatprep.subr.bf16.mxu0 0
    %1028 = vmatpush1.bf16.msra.mxu0 0
    %1029 = vmatprep.subr.bf16.mxu0 0
    %1030 = vmatpush1.bf16.msra.mxu0 0
    %1031 = vmatprep.subr.bf16.mxu0 0
    %1032 = vmatpush1.bf16.msra.mxu0 0
    %1033 = vmatprep.subr.bf16.mxu0 0
    %1034 = vmatpush1.bf16.msra.mxu0 0
    %1035 = vmatprep.subr.bf16.mxu0 0
    %1036 = vmatpush1.bf16.msra.mxu0 0
    %1037 = vmatprep.subr.bf16.mxu0 0
    %1038 = vmatpush1.bf16.msra.mxu0 0
    %1039 = vmatprep.mubr.bf16.mxu0 0
    %1040 = vmatmul.mubr.bf16.gmra.mrb[0].mxu0 %v1005
    %v1041 = vpop.f32.mrb[0].mxu0
    %v1042 = vadd.f32 %v149, %v1041
    %v1043 = vpop.f32.mrb[0].mxu0
    %v1044 = vpop.f32.mrb[0].mxu0
    %v1045 = vpop.f32.mrb[0].mxu0
    %1046 = vdwg.mxu0
    %s1047 = scalar_select %p1006, 1, 0
    %v1048 = vstv %s1047
    %vm1049 = vcmp.eq.s32.totalorder %v1048, 1
    %v1050 = vsel %vm1049, %v1042, 0.0
    %s1051 = scalar_lea.vmem [#allocation7], 56
    %v1052 = vld [vmem:[%s1051] sm:$0xff]
    %1053 = vmatprep.subr.bf16.mxu0 0
    %1054 = vmatpush1.bf16.msra.mxu0 %v276
    %1055 = vmatprep.subr.bf16.mxu0 0
    %1056 = vmatpush1.bf16.msra.mxu0 %v277
    %1057 = vmatprep.subr.bf16.mxu0 0
    %1058 = vmatpush1.bf16.msra.mxu0 %v278
    %1059 = vmatprep.subr.bf16.mxu0 0
    %1060 = vmatpush1.bf16.msra.mxu0 %v279
    %1061 = vmatprep.subr.bf16.mxu0 0
    %1062 = vmatpush1.bf16.msra.mxu0 %v280
    %1063 = vmatprep.subr.bf16.mxu0 0
    %1064 = vmatpush1.bf16.msra.mxu0 %v281
    %1065 = vmatprep.subr.bf16.mxu0 0
    %1066 = vmatpush1.bf16.msra.mxu0 %v282
    %1067 = vmatprep.subr.bf16.mxu0 0
    %1068 = vmatpush1.bf16.msra.mxu0 %v283
    %1069 = vmatprep.subr.bf16.mxu0 0
    %1070 = vmatpush1.bf16.msra.mxu0 0
    %1071 = vmatprep.subr.bf16.mxu0 0
    %1072 = vmatpush1.bf16.msra.mxu0 0
    %1073 = vmatprep.subr.bf16.mxu0 0
    %1074 = vmatpush1.bf16.msra.mxu0 0
    %1075 = vmatprep.subr.bf16.mxu0 0
    %1076 = vmatpush1.bf16.msra.mxu0 0
    %1077 = vmatprep.subr.bf16.mxu0 0
    %1078 = vmatpush1.bf16.msra.mxu0 0
    %1079 = vmatprep.subr.bf16.mxu0 0
    %1080 = vmatpush1.bf16.msra.mxu0 0
    %1081 = vmatprep.subr.bf16.mxu0 0
    %1082 = vmatpush1.bf16.msra.mxu0 0
    %1083 = vmatprep.subr.bf16.mxu0 0
    %1084 = vmatpush1.bf16.msra.mxu0 0
    %1085 = vmatprep.mubr.bf16.mxu0 0
    %1086 = vmatmul.mubr.bf16.gmra.mrb[0].mxu0 %v997
    %v1087 = vpop.f32.mrb[0].mxu0
    %v1088 = vadd.f32 0.0, %v1087
    %v1089 = vpop.f32.mrb[0].mxu0
    %v1090 = vpop.f32.mrb[0].mxu0
    %v1091 = vpop.f32.mrb[0].mxu0
    %1092 = vdwg.mxu0
    %v1093 = vadd.f32 %v1052, %v1088
    %v1094 = vadd.f32 %v1093, %v1050
    %v1095 = vsub.f32 %v1094, %v991
    %v1096 = vmul.f32 %v339, %v1095
    %v1097 = vadd.f32 %v1096, %v991
    %v1098 = vtanh.pop %v1097
    %v1099 = vsub.f32 %v1098, %v995
    %v1100 = vmul.f32 %v349, %v1099
    %v1101 = vadd.f32 %v1100, %v995
    %v1102 = vtanh.pop %v1101
    %v1103 = vpack.c.bf16 %v1102, %v1102
    %s1104 = sand.u32 %s1004, 3
    %s1105 = smul.addr %s1104, 4
    %s1106 = scalar_lea.vmem [#allocation5], %s1105
    %1107 = vst [vmem:[%s1106] sm:$0xf] %v1103
    %s1108 = scalar_lea.vmem [#allocation6], 56
    %1109 = vst [vmem:[%s1108] sm:$0xff] %v1102
    %1110 = vst [vmem:[#allocation2] sm:$0xff] %v1101
    %1111 = vst [vmem:[#allocation3] sm:$0xf] %v1103
    %1112 = vst [vmem:[#allocation4] sm:$0xff] %v1097
    %v1113 = vld [vmem:[#allocation6] sm:$0xff]
    %v1114 = vld [vmem:[#allocation6 + $0x8] sm:$0xff]
    %v1115 = vld [vmem:[#allocation6 + $0x10] sm:$0xff]
    %v1116 = vld [vmem:[#allocation6 + $0x18] sm:$0xff]
    %v1117 = vld [vmem:[#allocation6 + $0x20] sm:$0xff]
    %v1118 = vld [vmem:[#allocation6 + $0x28] sm:$0xff]
    %v1119 = vld [vmem:[#allocation6 + $0x30] sm:$0xff]
    %v1120 = vld [vmem:[#allocation6 + $0x38] sm:$0xff]
    %v1121 = vpack.c.bf16 %v1113, %v1113
    %v1122 = vpack.c.bf16 %v1114, %v1114
    %v1123 = vpack.c.bf16 %v1115, %v1115
    %v1124 = vpack.c.bf16 %v1116, %v1116
    %v1125 = vpack.c.bf16 %v1117, %v1117
    %v1126 = vpack.c.bf16 %v1118, %v1118
    %v1127 = vpack.c.bf16 %v1119, %v1119
    %v1128 = vpack.c.bf16 %v1120, %v1120
    %1129 = vst [vmem:[#allocation16] sm:$0xf] %v1121
    %1130 = vst [vmem:[#allocation16 + $0x4] sm:$0xf] %v1122
    %1131 = vst [vmem:[#allocation16 + $0x8] sm:$0xf] %v1123
    %1132 = vst [vmem:[#allocation16 + $0xc] sm:$0xf] %v1124
    %1133 = vst [vmem:[#allocation16 + $0x10] sm:$0xf] %v1125
    %1134 = vst [vmem:[#allocation16 + $0x14] sm:$0xf] %v1126
    %1135 = vst [vmem:[#allocation16 + $0x18] sm:$0xf] %v1127
    %1136 = vst [vmem:[#allocation16 + $0x1c] sm:$0xf] %v1128
    %v1137 = vpack.c.bf16 %v1114, %v1113
    %v1138 = vpack.c.bf16 %v1116, %v1115
    %v1139 = vpack.c.bf16 %v1118, %v1117
    %v1140 = vpack.c.bf16 %v1120, %v1119
    %v1141 = vld [vmem:[#allocation13] sm:$0xf]
    %v1142 = vld [vmem:[#allocation13 + $0x4] sm:$0xf]
    %v1143 = vld [vmem:[#allocation13 + $0x8] sm:$0xf]
    %v1144 = vld [vmem:[#allocation13 + $0xc] sm:$0xf]
    %v1145 = vld [vmem:[#allocation13 + $0x10] sm:$0xf]
    %v1146 = vld [vmem:[#allocation13 + $0x14] sm:$0xf]
    %v1147 = vld [vmem:[#allocation13 + $0x18] sm:$0xf]
    %v1148 = vld [vmem:[#allocation13 + $0x1c] sm:$0xf]
    %v1149 = vld [vmem:[#allocation13 + $0x20] sm:$0xf]
    %v1150 = vld [vmem:[#allocation13 + $0x24] sm:$0xf]
    %v1151 = vld [vmem:[#allocation13 + $0x28] sm:$0xf]
    %v1152 = vld [vmem:[#allocation13 + $0x2c] sm:$0xf]
    %v1153 = vld [vmem:[#allocation13 + $0x30] sm:$0xf]
    %v1154 = vld [vmem:[#allocation13 + $0x34] sm:$0xf]
    %v1155 = vld [vmem:[#allocation13 + $0x38] sm:$0xf]
    %v1156 = vld [vmem:[#allocation13 + $0x3c] sm:$0xf]
    %v1157 = vld [vmem:[%s5] sm:$0x1]
    %v1159 = vlaneseq
    %v1160 = vshrl.u32 %v1159, 7
    %v1161 = vsub.s32 0, %v1160
    %v1162 = vrot.slane %v1157, %v1161
    %v1180 = vunpack.c.l.b16 %v1141
    %v1181 = vunpack.c.l.b16 %v1142
    %v1182 = vunpack.c.l.b16 %v1143
    %v1183 = vunpack.c.l.b16 %v1144
    %v1184 = vunpack.c.l.b16 %v1145
    %v1185 = vunpack.c.l.b16 %v1146
    %v1186 = vunpack.c.l.b16 %v1147
    %v1187 = vunpack.c.l.b16 %v1148
    %v1188 = vunpack.c.l.b16 %v1149
    %v1189 = vunpack.c.l.b16 %v1150
    %v1190 = vunpack.c.l.b16 %v1151
    %v1191 = vunpack.c.l.b16 %v1152
    %v1192 = vunpack.c.l.b16 %v1153
    %v1193 = vunpack.c.l.b16 %v1154
    %v1194 = vunpack.c.l.b16 %v1155
    %v1195 = vunpack.c.l.b16 %v1156
    %v1196 = vpack.c.b16 %v1181, %v1180
    %v1197 = vpack.c.b16 %v1183, %v1182
    %v1198 = vpack.c.b16 %v1185, %v1184
    %v1199 = vpack.c.b16 %v1187, %v1186
    %v1200 = vpack.c.b16 %v1189, %v1188
    %v1201 = vpack.c.b16 %v1191, %v1190
    %v1202 = vpack.c.b16 %v1193, %v1192
    %v1203 = vpack.c.b16 %v1195, %v1194
    %1212 = vmatprep.subr.bf16.mxu0 0
    %1213 = vmatpush1.bf16.msra.mxu0 %v1196
    %1214 = vmatprep.subr.bf16.mxu0 0
    %1215 = vmatpush1.bf16.msra.mxu0 %v1197
    %1216 = vmatprep.subr.bf16.mxu0 0
    %1217 = vmatpush1.bf16.msra.mxu0 %v1198
    %1218 = vmatprep.subr.bf16.mxu0 0
    %1219 = vmatpush1.bf16.msra.mxu0 %v1199
    %1220 = vmatprep.subr.bf16.mxu0 0
    %1221 = vmatpush1.bf16.msra.mxu0 %v1200
    %1222 = vmatprep.subr.bf16.mxu0 0
    %1223 = vmatpush1.bf16.msra.mxu0 %v1201
    %1224 = vmatprep.subr.bf16.mxu0 0
    %1225 = vmatpush1.bf16.msra.mxu0 %v1202
    %1226 = vmatprep.subr.bf16.mxu0 0
    %1227 = vmatpush1.bf16.msra.mxu0 %v1203
    %1228 = vmatprep.subr.bf16.mxu0 0
    %1229 = vmatpush1.bf16.msra.mxu0 0
    %1230 = vmatprep.subr.bf16.mxu0 0
    %1231 = vmatpush1.bf16.msra.mxu0 0
    %1232 = vmatprep.subr.bf16.mxu0 0
    %1233 = vmatpush1.bf16.msra.mxu0 0
    %1234 = vmatprep.subr.bf16.mxu0 0
    %1235 = vmatpush1.bf16.msra.mxu0 0
    %1236 = vmatprep.subr.bf16.mxu0 0
    %1237 = vmatpush1.bf16.msra.mxu0 0
    %1238 = vmatprep.subr.bf16.mxu0 0
    %1239 = vmatpush1.bf16.msra.mxu0 0
    %1240 = vmatprep.subr.bf16.mxu0 0
    %1241 = vmatpush1.bf16.msra.mxu0 0
    %1242 = vmatprep.subr.bf16.mxu0 0
    %1243 = vmatpush1.bf16.msra.mxu0 0
    %1244 = vmatprep.mubr.bf16.mxu0 0
    %1245 = vmatmul.mubr.bf16.gmra.mrb[0].mxu0 %v1137
    %v1246 = vpop.f32.mrb[0].mxu0
    %v1247 = vadd.f32 %v1162, %v1246
    %v1248 = vpop.f32.mrb[0].mxu0
    %v1249 = vpop.f32.mrb[0].mxu0
    %v1250 = vadd.f32 %v1162, %v1249
    %v1251 = vpop.f32.mrb[0].mxu0
    %1252 = vmatprep.mubr.bf16.mxu0 0
    %1253 = vmatmul.mubr.bf16.gmra.mrb[0].mxu0 %v1138
    %v1254 = vpop.f32.mrb[0].mxu0
    %v1255 = vadd.f32 %v1162, %v1254
    %v1256 = vpop.f32.mrb[0].mxu0
    %v1257 = vpop.f32.mrb[0].mxu0
    %v1258 = vadd.f32 %v1162, %v1257
    %v1259 = vpop.f32.mrb[0].mxu0
    %1260 = vmatprep.mubr.bf16.mxu0 0
    %1261 = vmatmul.mubr.bf16.gmra.mrb[0].mxu0 %v1139
    %v1262 = vpop.f32.mrb[0].mxu0
    %v1263 = vadd.f32 %v1162, %v1262
    %v1264 = vpop.f32.mrb[0].mxu0
    %v1265 = vpop.f32.mrb[0].mxu0
    %v1266 = vadd.f32 %v1162, %v1265
    %v1267 = vpop.f32.mrb[0].mxu0
    %1268 = vmatprep.mubr.bf16.mxu0 0
    %1269 = vmatmul.mubr.bf16.gmra.mrb[0].mxu0 %v1140
    %v1270 = vpop.f32.mrb[0].mxu0
    %v1271 = vadd.f32 %v1162, %v1270
    %v1272 = vpop.f32.mrb[0].mxu0
    %v1273 = vpop.f32.mrb[0].mxu0
    %v1274 = vadd.f32 %v1162, %v1273
    %v1275 = vpop.f32.mrb[0].mxu0
    %1276 = vdwg.mxu0
    %1277 = vst [vmem:[#allocation15] sm:$0xff] %v1247
    %1278 = vst [vmem:[#allocation15 + $0x8] sm:$0xff] %v1250
    %1279 = vst [vmem:[#allocation15 + $0x10] sm:$0xff] %v1255
    %1280 = vst [vmem:[#allocation15 + $0x18] sm:$0xff] %v1258
    %1281 = vst [vmem:[#allocation15 + $0x20] sm:$0xff] %v1263
    %1282 = vst [vmem:[#allocation15 + $0x28] sm:$0xff] %v1266
    %1283 = vst [vmem:[#allocation15 + $0x30] sm:$0xff] %v1271
    %1284 = vst [vmem:[#allocation15 + $0x38] sm:$0xff] %v1274
    // Predicated region
    $region54: #{tpu_custom_call.1} parent=1 // pred_check
      _
    $region55: #{tpu_custom_call.1} parent=1 // pred_check_branch
      %1286 = sbr.rel (0) target = $region57
    $region56: #{tpu_custom_call.1} parent=1 // pred_region
      %s1288 = ssub.s32 1024, 1024
      %1289 = vsyncadd [#allocation9], %s1288
      %s1290 = sshll.u32 [#allocation15], 4
      %s1291 = int_to_ptr.vmem [resolvable:$true] %s1290
      %1296 = dma.vmem_to_hbm [thread:$0]  %s1291, 1024, %s8, [#allocation9], 128, 128, 8
    $region57: #{tpu_custom_call.1} parent=1 // pred_fallthru
      _
    // Predicated region
    $region58: #{tpu_custom_call.1} parent=1 // pred_check
      _
    $region59: #{tpu_custom_call.1} parent=1 // pred_check_branch
      %1298 = sbr.rel (0) target = $region61
    $region60: #{tpu_custom_call.1} parent=1 // pred_region
      %s1300 = ssub.s32 512, 512
      %1301 = vsyncadd [#allocation17], %s1300
      %s1302 = sshll.u32 [#allocation16], 4
      %s1303 = int_to_ptr.vmem [resolvable:$true] %s1302
      %1308 = dma.vmem_to_hbm [thread:$0]  %s1303, 512, %s9, [#allocation17], 64, 64, 4
    $region61: #{tpu_custom_call.1} parent=1 // pred_fallthru
      _
    // Predicated region
    $region62: #{tpu_custom_call.1} parent=1 // pred_check
      _
    $region63: #{tpu_custom_call.1} parent=1 // pred_check_branch
      %1310 = sbr.rel (0) target = $region65
    $region64: #{tpu_custom_call.1} parent=1 // pred_region
      %1311 = dma.done [#allocation9], 1024
    $region65: #{tpu_custom_call.1} parent=1 // pred_fallthru
      _
    // Predicated region
    $region66: #{tpu_custom_call.1} parent=1 // pred_check
      _
    $region67: #{tpu_custom_call.1} parent=1 // pred_check_branch
      %1313 = sbr.rel (0) target = $region69
    $region68: #{tpu_custom_call.1} parent=1 // pred_region
      %1314 = dma.done [#allocation17], 512
    $region69: #{tpu_custom_call.1} parent=1 // pred_fallthru
      _
    %1315 = vsyncpa [#allocation8], 1
    %1316 = vsyncpa [#allocation11], 1
    %1317 = vsyncpa [#allocation14], 1
    %1318 = vsyncpa [#allocation9], 1
    %1319 = vsyncpa [#allocation17], 1

</llo_original>
